<compile_context>
chip_gen: v7x
topology: tpu7x:2x2x1
jax: 0.10.0
libtpu: 0.0.40
codegen_flags: <defaults>
</compile_context>

<pallas_src>
import jax
import jax.numpy as jnp
from jax.experimental import pallas as pl
from jax.experimental.pallas import tpu as pltpu

IN_FEATURES = 512 * 512 * 3   # 786432
OUT_FEATURES = 2
LANES = 128


def _linear_kernel(x_ref, w_ref, o_ref, acc_ref):
    # x_ref  : (B, S, 128)  f32  -- K tile of the flattened input
    # w_ref  : (OUT, S, 128) f32 -- matching K tile of the (2, K) weight
    # o_ref  : (OUT, B)      f32 -- transposed output (transposed back in wrapper)
    # acc_ref: (OUT, B, 128) f32 -- per-lane partial sums, resident across K
    k = pl.program_id(0)

    @pl.when(k == 0)
    def _():
        acc_ref[...] = jnp.zeros_like(acc_ref)

    x = x_ref[...]                                    # (B, S, 128)
    for o in range(OUT_FEATURES):                     # static 2-iteration loop
        # VPU multiply + reduce over the sublane (S) axis only; the 128 lanes
        # of partial sums are kept so no cross-lane work happens per step.
        acc_ref[o] += jnp.sum(x * w_ref[o], axis=1)   # (B, 128)

    @pl.when(k == pl.num_programs(0) - 1)
    def _():
        # Single cross-lane reduction at the very end.
        o_ref[...] = jnp.sum(acc_ref[...], axis=2).astype(o_ref.dtype)  # (OUT, B)


def logistic_regression_forward(x, weight, bias, *, block_k=98304):
    """x: (B, 3, 512, 512) any float dtype; weight: (2, K) f32; bias: (2,) f32."""
    B = x.shape[0]
    assert block_k % LANES == 0 and IN_FEATURES % block_k == 0
    s_tile = block_k // LANES
    n_k = IN_FEATURES // block_k                      # 8 grid steps at default

    # Mirrors x.view(-1, K).type(torch.float32); reshapes are free (row-major).
    x3 = x.astype(jnp.float32).reshape(B, IN_FEATURES // LANES, LANES)
    w3 = weight.astype(jnp.float32).reshape(OUT_FEATURES, IN_FEATURES // LANES, LANES)

    grid_spec = pltpu.PrefetchScalarGridSpec(
        num_scalar_prefetch=0,
        grid=(n_k,),
        in_specs=[
            pl.BlockSpec((B, s_tile, LANES), lambda k: (0, k, 0)),             # x tile
            pl.BlockSpec((OUT_FEATURES, s_tile, LANES), lambda k: (0, k, 0)),  # W tile
        ],
        out_specs=pl.BlockSpec((OUT_FEATURES, B), lambda k: (0, 0)),
        scratch_shapes=[pltpu.VMEM((OUT_FEATURES, B, LANES), jnp.float32)],
    )

    out_t = pl.pallas_call(
        _linear_kernel,
        out_shape=jax.ShapeDtypeStruct((OUT_FEATURES, B), jnp.float32),
        grid_spec=grid_spec,
        compiler_params=pltpu.CompilerParams(
            dimension_semantics=("arbitrary",),        # K is a reduction axis
            vmem_limit_bytes=32 * 1024 * 1024,         # fits v5e/v6e/v7x scoped VMEM
        ),
    )(x3, w3)

    # Bias add on a (B, 2) result is trivially cheap in XLA.
    return out_t.T + bias.astype(jnp.float32)[None, :]


if __name__ == "__main__":
    key = jax.random.PRNGKey(0)
    kx, kw, kb = jax.random.split(key, 3)

    B = 2
    # NCHW input, consistent with the module's hardcoded 512*512*3 features.
    x = jax.random.normal(kx, (B, 3, 512, 512), dtype=jnp.float32)

    # Deterministic parameter init (shapes from nn.Linear(786432, 2)).
    bound = 1.0 / (IN_FEATURES ** 0.5)
    weight = jax.random.uniform(
        kw, (OUT_FEATURES, IN_FEATURES), dtype=jnp.float32,
        minval=-bound, maxval=bound)
    bias = jax.random.uniform(
        kb, (OUT_FEATURES,), dtype=jnp.float32, minval=-bound, maxval=bound)

    out = logistic_regression_forward(x, weight, bias)
    out = jax.block_until_ready(out)

    # Reference check in plain JAX (true f32 accumulation).
    x_flat = x.reshape(B, IN_FEATURES).astype(jnp.float32)
    ref = jnp.dot(x_flat, weight.T, precision=jax.lax.Precision.HIGHEST) + bias
    assert out.shape == (B, OUT_FEATURES)
    assert jnp.allclose(out, ref, rtol=2e-4, atol=2e-4)

    print("KERNEL_OK")
</pallas_src>

<mosaic_0001>
module attributes {stable_mosaic.version = 11 : i64} {
  func.func @_linear_kernel(%arg0: i32, %arg1: memref<2x768x128xf32, #tpu.memory_space<vmem>>, %arg2: memref<2x768x128xf32, #tpu.memory_space<vmem>>, %arg3: memref<2x2xf32, #tpu.memory_space<vmem>>, %arg4: memref<2x2x128xf32, #tpu.memory_space<vmem>>) attributes {dimension_semantics = [#tpu.dimension_semantics<arbitrary>], iteration_bounds = array<i64: 8>, scalar_prefetch = 0 : i64, scratch_operands = 1 : i64, tpu.core_type = #tpu.core_type<tc>, window_params = [{transform_indices = @transform_0, window_bounds = array<i64: 2, 768, 128>}, {transform_indices = @transform_1, window_bounds = array<i64: 2, 768, 128>}, {pipeline_mode = #tpu.pipeline_mode<synchronous>, transform_indices = @transform_2, window_bounds = array<i64: 2, 2>}]} {
    %c0_i32 = arith.constant 0 : i32
    %0 = arith.cmpi eq, %arg0, %c0_i32 : i32
    %1 = arith.extui %0 : i1 to i32
    %c0_i32_0 = arith.constant 0 : i32
    %2 = arith.cmpi ne, %1, %c0_i32_0 : i32
    scf.if %2 {
      %cst_22 = arith.constant 0.000000e+00 : f32
      %31 = vector.broadcast %cst_22 : f32 to vector<2x2x128xf32>
      %c0_23 = arith.constant 0 : index
      %c0_24 = arith.constant 0 : index
      %c0_25 = arith.constant 0 : index
      %32 = vector.load %arg4[%c0_23, %c0_24, %c0_25] : memref<2x2x128xf32, #tpu.memory_space<vmem>>, vector<2x2x128xf32>
      tpu.vector_store %arg4[%c0_23, %c0_24, %c0_25], %31 {strides = array<i32>} : memref<2x2x128xf32, #tpu.memory_space<vmem>>, vector<2x2x128xf32>,
    } else {
    }
    %c0 = arith.constant 0 : index
    %c0_1 = arith.constant 0 : index
    %c0_2 = arith.constant 0 : index
    %3 = vector.load %arg1[%c0, %c0_1, %c0_2] : memref<2x768x128xf32, #tpu.memory_space<vmem>>, vector<2x768x128xf32>
    %c0_3 = arith.constant 0 : index
    %c0_4 = arith.constant 0 : index
    %c0_5 = arith.constant 0 : index
    %4 = vector.load %arg4[%c0_3, %c0_4, %c0_5] : memref<2x2x128xf32, #tpu.memory_space<vmem>>, vector<1x2x128xf32>
    %5 = vector.shape_cast %4 : vector<1x2x128xf32> to vector<2x128xf32>
    %c0_6 = arith.constant 0 : index
    %c0_7 = arith.constant 0 : index
    %c0_8 = arith.constant 0 : index
    %6 = vector.load %arg2[%c0_6, %c0_7, %c0_8] : memref<2x768x128xf32, #tpu.memory_space<vmem>>, vector<1x768x128xf32>
    %7 = vector.shape_cast %6 : vector<1x768x128xf32> to vector<768x128xf32>
    %8 = vector.shape_cast %7 : vector<768x128xf32> to vector<1x768x128xf32>
    %9 = vector.broadcast %8 : vector<1x768x128xf32> to vector<2x768x128xf32>
    %10 = arith.mulf %3, %9 : vector<2x768x128xf32>
    %cst = arith.constant dense<0.000000e+00> : vector<2x128xf32>
    %11 = vector.multi_reduction <add>, %10, %cst [1] : vector<2x768x128xf32> to vector<2x128xf32>
    %12 = arith.addf %5, %11 : vector<2x128xf32>
    %c0_9 = arith.constant 0 : index
    %c0_10 = arith.constant 0 : index
    %c0_11 = arith.constant 0 : index
    %13 = vector.load %arg4[%c0_9, %c0_10, %c0_11] : memref<2x2x128xf32, #tpu.memory_space<vmem>>, vector<1x2x128xf32>
    %14 = vector.shape_cast %13 : vector<1x2x128xf32> to vector<2x128xf32>
    %15 = vector.shape_cast %12 : vector<2x128xf32> to vector<1x2x128xf32>
    tpu.vector_store %arg4[%c0_9, %c0_10, %c0_11], %15 {strides = array<i32>} : memref<2x2x128xf32, #tpu.memory_space<vmem>>, vector<1x2x128xf32>,
    %c1 = arith.constant 1 : index
    %c0_12 = arith.constant 0 : index
    %c0_13 = arith.constant 0 : index
    %16 = vector.load %arg4[%c1, %c0_12, %c0_13] : memref<2x2x128xf32, #tpu.memory_space<vmem>>, vector<1x2x128xf32>
    %17 = vector.shape_cast %16 : vector<1x2x128xf32> to vector<2x128xf32>
    %c1_14 = arith.constant 1 : index
    %c0_15 = arith.constant 0 : index
    %c0_16 = arith.constant 0 : index
    %18 = vector.load %arg2[%c1_14, %c0_15, %c0_16] : memref<2x768x128xf32, #tpu.memory_space<vmem>>, vector<1x768x128xf32>
    %19 = vector.shape_cast %18 : vector<1x768x128xf32> to vector<768x128xf32>
    %20 = vector.shape_cast %19 : vector<768x128xf32> to vector<1x768x128xf32>
    %21 = vector.broadcast %20 : vector<1x768x128xf32> to vector<2x768x128xf32>
    %22 = arith.mulf %3, %21 : vector<2x768x128xf32>
    %cst_17 = arith.constant dense<0.000000e+00> : vector<2x128xf32>
    %23 = vector.multi_reduction <add>, %22, %cst_17 [1] : vector<2x768x128xf32> to vector<2x128xf32>
    %24 = arith.addf %17, %23 : vector<2x128xf32>
    %c1_18 = arith.constant 1 : index
    %c0_19 = arith.constant 0 : index
    %c0_20 = arith.constant 0 : index
    %25 = vector.load %arg4[%c1_18, %c0_19, %c0_20] : memref<2x2x128xf32, #tpu.memory_space<vmem>>, vector<1x2x128xf32>
    %26 = vector.shape_cast %25 : vector<1x2x128xf32> to vector<2x128xf32>
    %27 = vector.shape_cast %24 : vector<2x128xf32> to vector<1x2x128xf32>
    tpu.vector_store %arg4[%c1_18, %c0_19, %c0_20], %27 {strides = array<i32>} : memref<2x2x128xf32, #tpu.memory_space<vmem>>, vector<1x2x128xf32>,
    %c7_i32 = arith.constant 7 : i32
    %28 = arith.cmpi eq, %arg0, %c7_i32 : i32
    %29 = arith.extui %28 : i1 to i32
    %c0_i32_21 = arith.constant 0 : i32
    %30 = arith.cmpi ne, %29, %c0_i32_21 : i32
    scf.if %30 {
      %c0_22 = arith.constant 0 : index
      %c0_23 = arith.constant 0 : index
      %c0_24 = arith.constant 0 : index
      %31 = vector.load %arg4[%c0_22, %c0_23, %c0_24] : memref<2x2x128xf32, #tpu.memory_space<vmem>>, vector<2x2x128xf32>
      %cst_25 = arith.constant dense<0.000000e+00> : vector<2x2xf32>
      %32 = vector.multi_reduction <add>, %31, %cst_25 [2] : vector<2x2x128xf32> to vector<2x2xf32>
      %c0_26 = arith.constant 0 : index
      %c0_27 = arith.constant 0 : index
      %33 = vector.load %arg3[%c0_26, %c0_27] : memref<2x2xf32, #tpu.memory_space<vmem>>, vector<2x2xf32>
      tpu.vector_store %arg3[%c0_26, %c0_27], %32 {strides = array<i32>} : memref<2x2xf32, #tpu.memory_space<vmem>>, vector<2x2xf32>,
    } else {
    }
    return
  }
  func.func @transform_0(%arg0: i32) -> (i32, i32, i32) {
    %c0_i32 = arith.constant 0 : i32
    %c0_i32_0 = arith.constant 0 : i32
    %c0_i32_1 = arith.constant 0 : i32
    return %c0_i32, %arg0, %c0_i32_0 : i32, i32, i32
  }
  func.func @transform_1(%arg0: i32) -> (i32, i32, i32) {
    %c0_i32 = arith.constant 0 : i32
    %c0_i32_0 = arith.constant 0 : i32
    %c0_i32_1 = arith.constant 0 : i32
    return %c0_i32, %arg0, %c0_i32_0 : i32, i32, i32
  }
  func.func @transform_2(%arg0: i32) -> (i32, i32) {
    %c0_i32 = arith.constant 0 : i32
    %c0_i32_0 = arith.constant 0 : i32
    %c0_i32_1 = arith.constant 0 : i32
    return %c0_i32, %c0_i32_0 : i32, i32
  }
}

</mosaic_0001>

<llo_original>
// kernel: tpu_custom_call.1
$region0: #{tpu_custom_call.1}
  #allocation0 [shape = 'u32[]', space=smem, size = 0x4, offset = 0x4, fixed_abs, tag = 'smem constant byte address 0x4 - core index']
  #allocation1 [shape = 'u32[144,128]{1,0:T(1,128)}', space=vmem, size = 0x12000, scoped, tag = 'internal scratch']
  #allocation2 [shape = 'f32[2,2,128]{2,1,0:T(2,128)}', space=vmem, size = 0x800, scoped, tag = 'scratch operand']
  #allocation9 [shape = 's32[]', space=sflag, size = 0x4, offset = 0, fixed_abs, tag = 'sflag constant byte address 0x0 - dummy sync flag']
  #allocation11 [shape = 's32[]', space=sflag, size = 0x4, offset = 0, fixed_abs, tag = 'sflag constant byte address 0x0 - dummy sync flag']
  %s0 = inlined_call_operand.hbm [shape: f32[2,6144,128], index: 0, kind: input, shape index: {}]
  %s1 = inlined_call_operand.hbm [shape: f32[2,6144,128], index: 1, kind: input, shape index: {}]
  %s2 = inlined_call_operand.hbm [shape: f32[2,2], index: 2, kind: output, shape index: {}]
  %s3 = sld [smem:[#allocation0]]
  $region57: #{tpu_custom_call.1} parent=0
    _
  %s5 = ssub.s32 1, %s3
  %s6 = scalar_select 0, %s5, %s3
  $region1: #{tpu_custom_call.1} parent=0
    #allocation3 [shape = 'u8[1572864]{0}', space=vmem, size = 0x180000, scoped, tag = 'input window, operand 0']
    #allocation4 [shape = 's32[2]{0}', space=sflag, size = 0x8, scoped, tag = 'scoped memory for tpu_custom_call.1']
    #allocation5 [shape = 's32[2]{0}', space=sflag, size = 0x8, scoped, tag = 'scoped memory for tpu_custom_call.1']
    #allocation6 [shape = 'u8[1572864]{0}', space=vmem, size = 0x180000, scoped, tag = 'input window, operand 1']
    #allocation7 [shape = 's32[2]{0}', space=sflag, size = 0x8, scoped, tag = 'scoped memory for tpu_custom_call.1']
    #allocation8 [shape = 'u8[1024]{0}', space=vmem, size = 0x400, scoped, tag = 'output window, operand 0, single buffered']
    %7 = vsyncpa [#allocation4], 0
    %s8 = scalar_lea.sflag [#allocation4], 1
    %9 = vsyncpa %s8, 0
    %10 = vsyncpa [#allocation7], 0
    %s11 = scalar_lea.sflag [#allocation7], 1
    %12 = vsyncpa %s11, 0
    %13 = vsyncpa [#allocation5], 0
    loop: start=0, step=1, limit=10
    $region2: #{tpu_custom_call.1} parent=1 // loop_pre_header
      _
    $region3: #{tpu_custom_call.1} parent=1 // loop_header
      %s15 = sphi 0, %s19
      %p16 = scmp.ge.s32.totalorder %s15, 10
      %s25 = sphi 0, %s27
      %s28 = sphi 0, %s25
      %s29 = sphi 0, %s28
      %s45 = sphi 0, %s29
      %s51 = sphi 0, %s53
      %s54 = sphi 0, %s51
      %s55 = sphi 0, %s54
      %s71 = sphi 0, %s55
      %s75 = sphi 0, %s75
      %s77 = sphi 0, %s75
      %s78 = sphi 0, %s77
      %s92 = sphi 0, %s78
    $region4: #{tpu_custom_call.1} parent=1 // loop_header_branch
      %18 = sbr.rel (%p16) target = $region8
    $region5: #{tpu_custom_call.1} parent=1 // loop_body
      %s20 = ssub.s32 %s15, 1
      %s21 = ssub.s32 %s15, 2
      %s22 = sadd.s32 %s15, 1
      %s23 = ssub.s32 %s15, %s22
      %p24 = scmp.eq.s32.totalorder %s23, 0
      %s26 = sadd.s32 %s25, 1
      %s27 = scalar_select %p24, %s25, %s26
      %p30 = pneg %p24
      %p31 = scmp.eq.s32.totalorder %s15, 7
      %p32 = por %p30, %p31
      %p33 = scmp.ne.s32.totalorder %s25, %s28
      %p34 = scmp.eq.s32.totalorder %s15, 0
      %p35 = por %p33, %p34
      %p36 = scmp.ne.s32.totalorder %s25, %s28
      %p37 = scmp.eq.s32.totalorder %s20, 7
      %p38 = por %p36, %p37
      %p39 = scmp.ne.s32.totalorder %s28, %s29
      %p40 = scmp.eq.s32.totalorder %s20, 0
      %p41 = por %p39, %p40
      %p42 = scmp.ne.s32.totalorder %s28, %s29
      %p43 = scmp.eq.s32.totalorder %s21, 7
      %p44 = por %p42, %p43
      %p46 = scmp.ne.s32.totalorder %s29, %s45
      %p47 = scmp.eq.s32.totalorder %s21, 0
      %p48 = por %p46, %p47
      %s49 = ssub.s32 %s15, %s22
      %p50 = scmp.eq.s32.totalorder %s49, 0
      %s52 = sadd.s32 %s51, 1
      %s53 = scalar_select %p50, %s51, %s52
      %p56 = pneg %p50
      %p57 = scmp.eq.s32.totalorder %s15, 7
      %p58 = por %p56, %p57
      %p59 = scmp.ne.s32.totalorder %s51, %s54
      %p60 = scmp.eq.s32.totalorder %s15, 0
      %p61 = por %p59, %p60
      %p62 = scmp.ne.s32.totalorder %s51, %s54
      %p63 = scmp.eq.s32.totalorder %s20, 7
      %p64 = por %p62, %p63
      %p65 = scmp.ne.s32.totalorder %s54, %s55
      %p66 = scmp.eq.s32.totalorder %s20, 0
      %p67 = por %p65, %p66
      %p68 = scmp.ne.s32.totalorder %s54, %s55
      %p69 = scmp.eq.s32.totalorder %s21, 7
      %p70 = por %p68, %p69
      %p72 = scmp.ne.s32.totalorder %s55, %s71
      %p73 = scmp.eq.s32.totalorder %s21, 0
      %p74 = por %p72, %p73
      %s76 = sadd.s32 %s75, 1
      %p79 = scmp.eq.s32.totalorder %s15, 7
      %p80 = scmp.ne.s32.totalorder %s75, %s77
      %p81 = scmp.eq.s32.totalorder %s15, 0
      %p82 = por %p80, %p81
      %p83 = scmp.ne.s32.totalorder %s75, %s77
      %p84 = scmp.eq.s32.totalorder %s20, 7
      %p85 = por %p83, %p84
      %p86 = scmp.ne.s32.totalorder %s77, %s78
      %p87 = scmp.eq.s32.totalorder %s20, 0
      %p88 = por %p86, %p87
      %p89 = scmp.ne.s32.totalorder %s77, %s78
      %p90 = scmp.eq.s32.totalorder %s21, 7
      %p91 = por %p89, %p90
      %p93 = scmp.ne.s32.totalorder %s78, %s92
      %p94 = scmp.eq.s32.totalorder %s21, 0
      %p95 = por %p93, %p94
      %p96 = scmp.le.s32.totalorder 1, %s15
      %p97 = scmp.lt.s32.totalorder %s15, 9
      %p98 = pnand %p96, %p97
      %p99 = pneg %p98
      // Predicated region
      $region9: #{tpu_custom_call.1} parent=5 // pred_check
        _
      $region10: #{tpu_custom_call.1} parent=5 // pred_check_branch
        %101 = sbr.rel (%p98) target = $region12
      $region11: #{tpu_custom_call.1} parent=5 // pred_region
        %s102 = ssub.s32 %s15, 1
      $region12: #{tpu_custom_call.1} parent=5 // pred_fallthru
        _
      %p103 = scmp.lt.s32.totalorder %s15, 8
      // Predicated region
      $region13: #{tpu_custom_call.1} parent=5 // pred_check
        %p104 = pneg %p103
      $region14: #{tpu_custom_call.1} parent=5 // pred_check_branch
        %106 = sbr.rel (%p104) target = $region16
      $region15: #{tpu_custom_call.1} parent=5 // pred_region
        // Predicated region
        $region17: #{tpu_custom_call.1} parent=15 // pred_check
          %p107 = pneg %p35
        $region18: #{tpu_custom_call.1} parent=15 // pred_check_branch
          %109 = sbr.rel (%p107) target = $region20
        $region19: #{tpu_custom_call.1} parent=15 // pred_region
          #allocation10 [shape = 'u32[6]{0}', space=smem, size = 0x18, scoped, tag = 'DMA stride descriptor']
          %s110 = sand.u32 %s25, 1
          %s111 = scalar_lea.sflag [#allocation4], %s110
          %s112 = sand.u32 %s25, 1
          %s113 = smul.addr %s112, 1536
          %s114 = scalar_lea.vmem [#allocation3], %s113
          %s115 = smul.u32 96, %s15
          %s117 = ssub.s32 24576, 24576
          %118 = vsyncadd %s111, %s117
          %s119 = smul.addr %s115, 128
          %s120 = scalar_lea.hbm %s0, %s119
          %s122 = sshll.u32 1, 14
          %s123 = sxor.u32 4294967295, %s122
          %s125 = sld [smem:[#allocation0]]
          %s126 = sadd.s32 2, %s125
          %s128 = sshll.u32 7, 26
          %s129 = sxor.u32 4294967295, %s128
          %s130 = sand.u32 0, %s129
          %s131 = sshll.u32 %s126, 26
          %s132 = sor.u32 %s130, %s131
          %s133 = sshll.u32 %s114, 4
          %s134 = int_to_ptr.vmem [resolvable:$true] %s133
          %140 = sst [smem:[#allocation10]] 98304
          %s141 = scalar_lea.smem [#allocation10], 1
          %142 = sst [smem:[%s141]] 12288
          %s143 = scalar_lea.smem [#allocation10], 2
          %144 = sst [smem:[%s143]] 96
          %s145 = scalar_lea.smem [#allocation10], 3
          %146 = sst [smem:[%s145]] 128
          %s147 = scalar_lea.smem [#allocation10], 4
          %148 = sst [smem:[%s147]] 128
          %s149 = scalar_lea.smem [#allocation10], 5
          %150 = sst [smem:[%s149]] 8
          %152 = dma.general %s120, 24576, %s134, %s111, [#allocation9], [#allocation10], %s132, 0
        $region20: #{tpu_custom_call.1} parent=15 // pred_fallthru
          _
        // Predicated region
        $region21: #{tpu_custom_call.1} parent=15 // pred_check
          %p153 = pneg %p61
        $region22: #{tpu_custom_call.1} parent=15 // pred_check_branch
          %155 = sbr.rel (%p153) target = $region24
        $region23: #{tpu_custom_call.1} parent=15 // pred_region
          #allocation12 [shape = 'u32[6]{0}', space=smem, size = 0x18, scoped, tag = 'DMA stride descriptor']
          %s156 = sand.u32 %s51, 1
          %s157 = scalar_lea.sflag [#allocation7], %s156
          %s158 = sand.u32 %s51, 1
          %s159 = smul.addr %s158, 1536
          %s160 = scalar_lea.vmem [#allocation6], %s159
          %s161 = smul.u32 96, %s15
          %s163 = ssub.s32 24576, 24576
          %164 = vsyncadd %s157, %s163
          %s165 = smul.addr %s161, 128
          %s166 = scalar_lea.hbm %s1, %s165
          %s168 = sshll.u32 1, 14
          %s169 = sxor.u32 4294967295, %s168
          %s171 = sld [smem:[#allocation0]]
          %s172 = sadd.s32 2, %s171
          %s174 = sshll.u32 7, 26
          %s175 = sxor.u32 4294967295, %s174
          %s176 = sand.u32 0, %s175
          %s177 = sshll.u32 %s172, 26
          %s178 = sor.u32 %s176, %s177
          %s179 = sshll.u32 %s160, 4
          %s180 = int_to_ptr.vmem [resolvable:$true] %s179
          %186 = sst [smem:[#allocation12]] 98304
          %s187 = scalar_lea.smem [#allocation12], 1
          %188 = sst [smem:[%s187]] 12288
          %s189 = scalar_lea.smem [#allocation12], 2
          %190 = sst [smem:[%s189]] 96
          %s191 = scalar_lea.smem [#allocation12], 3
          %192 = sst [smem:[%s191]] 128
          %s193 = scalar_lea.smem [#allocation12], 4
          %194 = sst [smem:[%s193]] 128
          %s195 = scalar_lea.smem [#allocation12], 5
          %196 = sst [smem:[%s195]] 8
          %198 = dma.general %s166, 24576, %s180, %s157, [#allocation11], [#allocation12], %s178, 0
        $region24: #{tpu_custom_call.1} parent=15 // pred_fallthru
          _
      $region16: #{tpu_custom_call.1} parent=5 // pred_fallthru
        _
      %p199 = scmp.le.s32.totalorder 1, %s15
      %p200 = scmp.lt.s32.totalorder %s15, 9
      %p201 = pnand %p199, %p200
      %p202 = pneg %p201
      // Predicated region
      $region25: #{tpu_custom_call.1} parent=5 // pred_check
        _
      $region26: #{tpu_custom_call.1} parent=5 // pred_check_branch
        %204 = sbr.rel (%p201) target = $region28
      $region27: #{tpu_custom_call.1} parent=5 // pred_region
        %s205 = ssub.s32 %s15, 1
        %s206 = sand.u32 %s28, 1
        %s207 = scalar_lea.sflag [#allocation4], %s206
        %s208 = sand.u32 %s28, 1
        %s209 = smul.addr %s208, 1536
        %s210 = scalar_lea.vmem [#allocation3], %s209
        // Predicated region
        $region29: #{tpu_custom_call.1} parent=27 // pred_check
          %p211 = pneg %p41
        $region30: #{tpu_custom_call.1} parent=27 // pred_check_branch
          %213 = sbr.rel (%p211) target = $region32
        $region31: #{tpu_custom_call.1} parent=27 // pred_region
          %214 = dma.done %s207, 24576
        $region32: #{tpu_custom_call.1} parent=27 // pred_fallthru
          _
        %s215 = sand.u32 %s54, 1
        %s216 = scalar_lea.sflag [#allocation7], %s215
        %s217 = sand.u32 %s54, 1
        %s218 = smul.addr %s217, 1536
        %s219 = scalar_lea.vmem [#allocation6], %s218
        // Predicated region
        $region33: #{tpu_custom_call.1} parent=27 // pred_check
          %p220 = pneg %p67
        $region34: #{tpu_custom_call.1} parent=27 // pred_check_branch
          %222 = sbr.rel (%p220) target = $region36
        $region35: #{tpu_custom_call.1} parent=27 // pred_region
          %223 = dma.done %s216, 24576
        $region36: #{tpu_custom_call.1} parent=27 // pred_fallthru
          _
        %s224 = sand.u32 %s28, 1
        %s225 = scalar_lea.sflag [#allocation4], %s224
        %s226 = sand.u32 %s28, 1
        %s227 = smul.addr %s226, 1536
        %s228 = scalar_lea.vmem [#allocation3], %s227
        %p229 = pneg %p41
        %p230 = pneg %p38
        %s231 = sand.u32 %s54, 1
        %s232 = scalar_lea.sflag [#allocation7], %s231
        %s233 = sand.u32 %s54, 1
        %s234 = smul.addr %s233, 1536
        %s235 = scalar_lea.vmem [#allocation6], %s234
        %p236 = pneg %p67
        %p237 = pneg %p64
        %p238 = pneg %p88
        %p239 = pneg %p85
        %s240 = smul.u32 96, %s20
        %s241 = smul.u32 96, %s20
        %p242 = scmp.eq.s32.totalorder %s20, 0
        // Predicated region
        $region37: #{tpu_custom_call.1} parent=27 // pred_check
          %p243 = pneg %p242
        $region38: #{tpu_custom_call.1} parent=27 // pred_check_branch
          %245 = sbr.rel (%p243) target = $region40
        $region39: #{tpu_custom_call.1} parent=27 // pred_region
          %246 = vst [vmem:[#allocation2] sm:$0x3] 0.0
          %247 = vst [vmem:[#allocation2 + $0x2] sm:$0x3] 0.0
        $region40: #{tpu_custom_call.1} parent=27 // pred_fallthru
          _
        %v248 = vld [vmem:[%s210] sm:$0xff]
        %v249 = vld [vmem:[%s210 + $0x8] sm:$0xff]
        %v250 = vld [vmem:[%s210 + $0x10] sm:$0xff]
        %v251 = vld [vmem:[%s210 + $0x18] sm:$0xff]
        %v252 = vld [vmem:[%s210 + $0x20] sm:$0xff]
        %v253 = vld [vmem:[%s210 + $0x28] sm:$0xff]
        %v254 = vld [vmem:[%s210 + $0x30] sm:$0xff]
        %v255 = vld [vmem:[%s210 + $0x38] sm:$0xff]
        %v256 = vld [vmem:[%s210 + $0x40] sm:$0xff]
        %v257 = vld [vmem:[%s210 + $0x48] sm:$0xff]
        %v258 = vld [vmem:[%s210 + $0x50] sm:$0xff]
        %v259 = vld [vmem:[%s210 + $0x58] sm:$0xff]
        %v260 = vld [vmem:[%s210 + $0x60] sm:$0xff]
        %v261 = vld [vmem:[%s210 + $0x68] sm:$0xff]
        %v262 = vld [vmem:[%s210 + $0x70] sm:$0xff]
        %v263 = vld [vmem:[%s210 + $0x78] sm:$0xff]
        %v264 = vld [vmem:[%s210 + $0x80] sm:$0xff]
        %v265 = vld [vmem:[%s210 + $0x88] sm:$0xff]
        %v266 = vld [vmem:[%s210 + $0x90] sm:$0xff]
        %v267 = vld [vmem:[%s210 + $0x98] sm:$0xff]
        %v268 = vld [vmem:[%s210 + $0xa0] sm:$0xff]
        %v269 = vld [vmem:[%s210 + $0xa8] sm:$0xff]
        %v270 = vld [vmem:[%s210 + $0xb0] sm:$0xff]
        %v271 = vld [vmem:[%s210 + $0xb8] sm:$0xff]
        %v272 = vld [vmem:[%s210 + $0xc0] sm:$0xff]
        %v273 = vld [vmem:[%s210 + $0xc8] sm:$0xff]
        %v274 = vld [vmem:[%s210 + $0xd0] sm:$0xff]
        %v275 = vld [vmem:[%s210 + $0xd8] sm:$0xff]
        %v276 = vld [vmem:[%s210 + $0xe0] sm:$0xff]
        %v277 = vld [vmem:[%s210 + $0xe8] sm:$0xff]
        %v278 = vld [vmem:[%s210 + $0xf0] sm:$0xff]
        %v279 = vld [vmem:[%s210 + $0xf8] sm:$0xff]
        %v280 = vld [vmem:[%s210 + $0x100] sm:$0xff]
        %v281 = vld [vmem:[%s210 + $0x108] sm:$0xff]
        %v282 = vld [vmem:[%s210 + $0x110] sm:$0xff]
        %v283 = vld [vmem:[%s210 + $0x118] sm:$0xff]
        %v284 = vld [vmem:[%s210 + $0x120] sm:$0xff]
        %v285 = vld [vmem:[%s210 + $0x128] sm:$0xff]
        %v286 = vld [vmem:[%s210 + $0x130] sm:$0xff]
        %v287 = vld [vmem:[%s210 + $0x138] sm:$0xff]
        %v288 = vld [vmem:[%s210 + $0x140] sm:$0xff]
        %v289 = vld [vmem:[%s210 + $0x148] sm:$0xff]
        %v290 = vld [vmem:[%s210 + $0x150] sm:$0xff]
        %v291 = vld [vmem:[%s210 + $0x158] sm:$0xff]
        %v292 = vld [vmem:[%s210 + $0x160] sm:$0xff]
        %v293 = vld [vmem:[%s210 + $0x168] sm:$0xff]
        %v294 = vld [vmem:[%s210 + $0x170] sm:$0xff]
        %v295 = vld [vmem:[%s210 + $0x178] sm:$0xff]
        %v296 = vld [vmem:[%s210 + $0x180] sm:$0xff]
        %v297 = vld [vmem:[%s210 + $0x188] sm:$0xff]
        %v298 = vld [vmem:[%s210 + $0x190] sm:$0xff]
        %v299 = vld [vmem:[%s210 + $0x198] sm:$0xff]
        %v300 = vld [vmem:[%s210 + $0x1a0] sm:$0xff]
        %v301 = vld [vmem:[%s210 + $0x1a8] sm:$0xff]
        %v302 = vld [vmem:[%s210 + $0x1b0] sm:$0xff]
        %v303 = vld [vmem:[%s210 + $0x1b8] sm:$0xff]
        %v304 = vld [vmem:[%s210 + $0x1c0] sm:$0xff]
        %v305 = vld [vmem:[%s210 + $0x1c8] sm:$0xff]
        %v306 = vld [vmem:[%s210 + $0x1d0] sm:$0xff]
        %v307 = vld [vmem:[%s210 + $0x1d8] sm:$0xff]
        %v308 = vld [vmem:[%s210 + $0x1e0] sm:$0xff]
        %v309 = vld [vmem:[%s210 + $0x1e8] sm:$0xff]
        %v310 = vld [vmem:[%s210 + $0x1f0] sm:$0xff]
        %v311 = vld [vmem:[%s210 + $0x1f8] sm:$0xff]
        %v312 = vld [vmem:[%s210 + $0x200] sm:$0xff]
        %v313 = vld [vmem:[%s210 + $0x208] sm:$0xff]
        %v314 = vld [vmem:[%s210 + $0x210] sm:$0xff]
        %v315 = vld [vmem:[%s210 + $0x218] sm:$0xff]
        %v316 = vld [vmem:[%s210 + $0x220] sm:$0xff]
        %v317 = vld [vmem:[%s210 + $0x228] sm:$0xff]
        %v318 = vld [vmem:[%s210 + $0x230] sm:$0xff]
        %v319 = vld [vmem:[%s210 + $0x238] sm:$0xff]
        %v320 = vld [vmem:[%s210 + $0x240] sm:$0xff]
        %v321 = vld [vmem:[%s210 + $0x248] sm:$0xff]
        %v322 = vld [vmem:[%s210 + $0x250] sm:$0xff]
        %v323 = vld [vmem:[%s210 + $0x258] sm:$0xff]
        %v324 = vld [vmem:[%s210 + $0x260] sm:$0xff]
        %v325 = vld [vmem:[%s210 + $0x268] sm:$0xff]
        %v326 = vld [vmem:[%s210 + $0x270] sm:$0xff]
        %v327 = vld [vmem:[%s210 + $0x278] sm:$0xff]
        %v328 = vld [vmem:[%s210 + $0x280] sm:$0xff]
        %v329 = vld [vmem:[%s210 + $0x288] sm:$0xff]
        %v330 = vld [vmem:[%s210 + $0x290] sm:$0xff]
        %v331 = vld [vmem:[%s210 + $0x298] sm:$0xff]
        %v332 = vld [vmem:[%s210 + $0x2a0] sm:$0xff]
        %v333 = vld [vmem:[%s210 + $0x2a8] sm:$0xff]
        %v334 = vld [vmem:[%s210 + $0x2b0] sm:$0xff]
        %v335 = vld [vmem:[%s210 + $0x2b8] sm:$0xff]
        %v336 = vld [vmem:[%s210 + $0x2c0] sm:$0xff]
        %v337 = vld [vmem:[%s210 + $0x2c8] sm:$0xff]
        %v338 = vld [vmem:[%s210 + $0x2d0] sm:$0xff]
        %v339 = vld [vmem:[%s210 + $0x2d8] sm:$0xff]
        %v340 = vld [vmem:[%s210 + $0x2e0] sm:$0xff]
        %v341 = vld [vmem:[%s210 + $0x2e8] sm:$0xff]
        %v342 = vld [vmem:[%s210 + $0x2f0] sm:$0xff]
        %v343 = vld [vmem:[%s210 + $0x2f8] sm:$0xff]
        %v344 = vld [vmem:[%s210 + $0x300] sm:$0xff]
        %v345 = vld [vmem:[%s210 + $0x308] sm:$0xff]
        %v346 = vld [vmem:[%s210 + $0x310] sm:$0xff]
        %v347 = vld [vmem:[%s210 + $0x318] sm:$0xff]
        %v348 = vld [vmem:[%s210 + $0x320] sm:$0xff]
        %v349 = vld [vmem:[%s210 + $0x328] sm:$0xff]
        %v350 = vld [vmem:[%s210 + $0x330] sm:$0xff]
        %v351 = vld [vmem:[%s210 + $0x338] sm:$0xff]
        %v352 = vld [vmem:[%s210 + $0x340] sm:$0xff]
        %v353 = vld [vmem:[%s210 + $0x348] sm:$0xff]
        %v354 = vld [vmem:[%s210 + $0x350] sm:$0xff]
        %v355 = vld [vmem:[%s210 + $0x358] sm:$0xff]
        %v356 = vld [vmem:[%s210 + $0x360] sm:$0xff]
        %v357 = vld [vmem:[%s210 + $0x368] sm:$0xff]
        %v358 = vld [vmem:[%s210 + $0x370] sm:$0xff]
        %v359 = vld [vmem:[%s210 + $0x378] sm:$0xff]
        %v360 = vld [vmem:[%s210 + $0x380] sm:$0xff]
        %v361 = vld [vmem:[%s210 + $0x388] sm:$0xff]
        %v362 = vld [vmem:[%s210 + $0x390] sm:$0xff]
        %v363 = vld [vmem:[%s210 + $0x398] sm:$0xff]
        %v364 = vld [vmem:[%s210 + $0x3a0] sm:$0xff]
        %v365 = vld [vmem:[%s210 + $0x3a8] sm:$0xff]
        %v366 = vld [vmem:[%s210 + $0x3b0] sm:$0xff]
        %v367 = vld [vmem:[%s210 + $0x3b8] sm:$0xff]
        %v368 = vld [vmem:[%s210 + $0x3c0] sm:$0xff]
        %v369 = vld [vmem:[%s210 + $0x3c8] sm:$0xff]
        %v370 = vld [vmem:[%s210 + $0x3d0] sm:$0xff]
        %v371 = vld [vmem:[%s210 + $0x3d8] sm:$0xff]
        %v372 = vld [vmem:[%s210 + $0x3e0] sm:$0xff]
        %v373 = vld [vmem:[%s210 + $0x3e8] sm:$0xff]
        %v374 = vld [vmem:[%s210 + $0x3f0] sm:$0xff]
        %v375 = vld [vmem:[%s210 + $0x3f8] sm:$0xff]
        %v376 = vld [vmem:[%s210 + $0x400] sm:$0xff]
        %v377 = vld [vmem:[%s210 + $0x408] sm:$0xff]
        %v378 = vld [vmem:[%s210 + $0x410] sm:$0xff]
        %v379 = vld [vmem:[%s210 + $0x418] sm:$0xff]
        %v380 = vld [vmem:[%s210 + $0x420] sm:$0xff]
        %v381 = vld [vmem:[%s210 + $0x428] sm:$0xff]
        %v382 = vld [vmem:[%s210 + $0x430] sm:$0xff]
        %v383 = vld [vmem:[%s210 + $0x438] sm:$0xff]
        %v384 = vld [vmem:[%s210 + $0x440] sm:$0xff]
        %v385 = vld [vmem:[%s210 + $0x448] sm:$0xff]
        %v386 = vld [vmem:[%s210 + $0x450] sm:$0xff]
        %v387 = vld [vmem:[%s210 + $0x458] sm:$0xff]
        %v388 = vld [vmem:[%s210 + $0x460] sm:$0xff]
        %v389 = vld [vmem:[%s210 + $0x468] sm:$0xff]
        %v390 = vld [vmem:[%s210 + $0x470] sm:$0xff]
        %v391 = vld [vmem:[%s210 + $0x478] sm:$0xff]
        %v392 = vld [vmem:[%s210 + $0x480] sm:$0xff]
        %v393 = vld [vmem:[%s210 + $0x488] sm:$0xff]
        %v394 = vld [vmem:[%s210 + $0x490] sm:$0xff]
        %v395 = vld [vmem:[%s210 + $0x498] sm:$0xff]
        %v396 = vld [vmem:[%s210 + $0x4a0] sm:$0xff]
        %v397 = vld [vmem:[%s210 + $0x4a8] sm:$0xff]
        %v398 = vld [vmem:[%s210 + $0x4b0] sm:$0xff]
        %v399 = vld [vmem:[%s210 + $0x4b8] sm:$0xff]
        %v400 = vld [vmem:[%s210 + $0x4c0] sm:$0xff]
        %v401 = vld [vmem:[%s210 + $0x4c8] sm:$0xff]
        %v402 = vld [vmem:[%s210 + $0x4d0] sm:$0xff]
        %v403 = vld [vmem:[%s210 + $0x4d8] sm:$0xff]
        %v404 = vld [vmem:[%s210 + $0x4e0] sm:$0xff]
        %v405 = vld [vmem:[%s210 + $0x4e8] sm:$0xff]
        %v406 = vld [vmem:[%s210 + $0x4f0] sm:$0xff]
        %v407 = vld [vmem:[%s210 + $0x4f8] sm:$0xff]
        %v408 = vld [vmem:[%s210 + $0x500] sm:$0xff]
        %v409 = vld [vmem:[%s210 + $0x508] sm:$0xff]
        %v410 = vld [vmem:[%s210 + $0x510] sm:$0xff]
        %v411 = vld [vmem:[%s210 + $0x518] sm:$0xff]
        %v412 = vld [vmem:[%s210 + $0x520] sm:$0xff]
        %v413 = vld [vmem:[%s210 + $0x528] sm:$0xff]
        %v414 = vld [vmem:[%s210 + $0x530] sm:$0xff]
        %v415 = vld [vmem:[%s210 + $0x538] sm:$0xff]
        %v416 = vld [vmem:[%s210 + $0x540] sm:$0xff]
        %v417 = vld [vmem:[%s210 + $0x548] sm:$0xff]
        %v418 = vld [vmem:[%s210 + $0x550] sm:$0xff]
        %v419 = vld [vmem:[%s210 + $0x558] sm:$0xff]
        %v420 = vld [vmem:[%s210 + $0x560] sm:$0xff]
        %v421 = vld [vmem:[%s210 + $0x568] sm:$0xff]
        %v422 = vld [vmem:[%s210 + $0x570] sm:$0xff]
        %v423 = vld [vmem:[%s210 + $0x578] sm:$0xff]
        %v424 = vld [vmem:[%s210 + $0x580] sm:$0xff]
        %v425 = vld [vmem:[%s210 + $0x588] sm:$0xff]
        %v426 = vld [vmem:[%s210 + $0x590] sm:$0xff]
        %v427 = vld [vmem:[%s210 + $0x598] sm:$0xff]
        %v428 = vld [vmem:[%s210 + $0x5a0] sm:$0xff]
        %v429 = vld [vmem:[%s210 + $0x5a8] sm:$0xff]
        %v430 = vld [vmem:[%s210 + $0x5b0] sm:$0xff]
        %v431 = vld [vmem:[%s210 + $0x5b8] sm:$0xff]
        %v432 = vld [vmem:[%s210 + $0x5c0] sm:$0xff]
        %v433 = vld [vmem:[%s210 + $0x5c8] sm:$0xff]
        %v434 = vld [vmem:[%s210 + $0x5d0] sm:$0xff]
        %v435 = vld [vmem:[%s210 + $0x5d8] sm:$0xff]
        %v436 = vld [vmem:[%s210 + $0x5e0] sm:$0xff]
        %v437 = vld [vmem:[%s210 + $0x5e8] sm:$0xff]
        %v438 = vld [vmem:[%s210 + $0x5f0] sm:$0xff]
        %v439 = vld [vmem:[%s210 + $0x5f8] sm:$0xff]
        %v440 = vld [vmem:[#allocation2] sm:$0x3]
        %v441 = vld [vmem:[%s219] sm:$0xff]
        %v442 = vld [vmem:[%s219 + $0x8] sm:$0xff]
        %v443 = vld [vmem:[%s219 + $0x10] sm:$0xff]
        %v444 = vld [vmem:[%s219 + $0x18] sm:$0xff]
        %v445 = vld [vmem:[%s219 + $0x20] sm:$0xff]
        %v446 = vld [vmem:[%s219 + $0x28] sm:$0xff]
        %v447 = vld [vmem:[%s219 + $0x30] sm:$0xff]
        %v448 = vld [vmem:[%s219 + $0x38] sm:$0xff]
        %v449 = vld [vmem:[%s219 + $0x40] sm:$0xff]
        %v450 = vld [vmem:[%s219 + $0x48] sm:$0xff]
        %v451 = vld [vmem:[%s219 + $0x50] sm:$0xff]
        %v452 = vld [vmem:[%s219 + $0x58] sm:$0xff]
        %v453 = vld [vmem:[%s219 + $0x60] sm:$0xff]
        %v454 = vld [vmem:[%s219 + $0x68] sm:$0xff]
        %v455 = vld [vmem:[%s219 + $0x70] sm:$0xff]
        %v456 = vld [vmem:[%s219 + $0x78] sm:$0xff]
        %v457 = vld [vmem:[%s219 + $0x80] sm:$0xff]
        %v458 = vld [vmem:[%s219 + $0x88] sm:$0xff]
        %v459 = vld [vmem:[%s219 + $0x90] sm:$0xff]
        %v460 = vld [vmem:[%s219 + $0x98] sm:$0xff]
        %v461 = vld [vmem:[%s219 + $0xa0] sm:$0xff]
        %v462 = vld [vmem:[%s219 + $0xa8] sm:$0xff]
        %v463 = vld [vmem:[%s219 + $0xb0] sm:$0xff]
        %v464 = vld [vmem:[%s219 + $0xb8] sm:$0xff]
        %v465 = vld [vmem:[%s219 + $0xc0] sm:$0xff]
        %v466 = vld [vmem:[%s219 + $0xc8] sm:$0xff]
        %v467 = vld [vmem:[%s219 + $0xd0] sm:$0xff]
        %v468 = vld [vmem:[%s219 + $0xd8] sm:$0xff]
        %v469 = vld [vmem:[%s219 + $0xe0] sm:$0xff]
        %v470 = vld [vmem:[%s219 + $0xe8] sm:$0xff]
        %v471 = vld [vmem:[%s219 + $0xf0] sm:$0xff]
        %v472 = vld [vmem:[%s219 + $0xf8] sm:$0xff]
        %v473 = vld [vmem:[%s219 + $0x100] sm:$0xff]
        %v474 = vld [vmem:[%s219 + $0x108] sm:$0xff]
        %v475 = vld [vmem:[%s219 + $0x110] sm:$0xff]
        %v476 = vld [vmem:[%s219 + $0x118] sm:$0xff]
        %v477 = vld [vmem:[%s219 + $0x120] sm:$0xff]
        %v478 = vld [vmem:[%s219 + $0x128] sm:$0xff]
        %v479 = vld [vmem:[%s219 + $0x130] sm:$0xff]
        %v480 = vld [vmem:[%s219 + $0x138] sm:$0xff]
        %v481 = vld [vmem:[%s219 + $0x140] sm:$0xff]
        %v482 = vld [vmem:[%s219 + $0x148] sm:$0xff]
        %v483 = vld [vmem:[%s219 + $0x150] sm:$0xff]
        %v484 = vld [vmem:[%s219 + $0x158] sm:$0xff]
        %v485 = vld [vmem:[%s219 + $0x160] sm:$0xff]
        %v486 = vld [vmem:[%s219 + $0x168] sm:$0xff]
        %v487 = vld [vmem:[%s219 + $0x170] sm:$0xff]
        %v488 = vld [vmem:[%s219 + $0x178] sm:$0xff]
        %v489 = vld [vmem:[%s219 + $0x180] sm:$0xff]
        %v490 = vld [vmem:[%s219 + $0x188] sm:$0xff]
        %v491 = vld [vmem:[%s219 + $0x190] sm:$0xff]
        %v492 = vld [vmem:[%s219 + $0x198] sm:$0xff]
        %v493 = vld [vmem:[%s219 + $0x1a0] sm:$0xff]
        %v494 = vld [vmem:[%s219 + $0x1a8] sm:$0xff]
        %v495 = vld [vmem:[%s219 + $0x1b0] sm:$0xff]
        %v496 = vld [vmem:[%s219 + $0x1b8] sm:$0xff]
        %v497 = vld [vmem:[%s219 + $0x1c0] sm:$0xff]
        %v498 = vld [vmem:[%s219 + $0x1c8] sm:$0xff]
        %v499 = vld [vmem:[%s219 + $0x1d0] sm:$0xff]
        %v500 = vld [vmem:[%s219 + $0x1d8] sm:$0xff]
        %v501 = vld [vmem:[%s219 + $0x1e0] sm:$0xff]
        %v502 = vld [vmem:[%s219 + $0x1e8] sm:$0xff]
        %v503 = vld [vmem:[%s219 + $0x1f0] sm:$0xff]
        %v504 = vld [vmem:[%s219 + $0x1f8] sm:$0xff]
        %v505 = vld [vmem:[%s219 + $0x200] sm:$0xff]
        %v506 = vld [vmem:[%s219 + $0x208] sm:$0xff]
        %v507 = vld [vmem:[%s219 + $0x210] sm:$0xff]
        %v508 = vld [vmem:[%s219 + $0x218] sm:$0xff]
        %v509 = vld [vmem:[%s219 + $0x220] sm:$0xff]
        %v510 = vld [vmem:[%s219 + $0x228] sm:$0xff]
        %v511 = vld [vmem:[%s219 + $0x230] sm:$0xff]
        %v512 = vld [vmem:[%s219 + $0x238] sm:$0xff]
        %v513 = vld [vmem:[%s219 + $0x240] sm:$0xff]
        %v514 = vld [vmem:[%s219 + $0x248] sm:$0xff]
        %v515 = vld [vmem:[%s219 + $0x250] sm:$0xff]
        %v516 = vld [vmem:[%s219 + $0x258] sm:$0xff]
        %v517 = vld [vmem:[%s219 + $0x260] sm:$0xff]
        %v518 = vld [vmem:[%s219 + $0x268] sm:$0xff]
        %v519 = vld [vmem:[%s219 + $0x270] sm:$0xff]
        %v520 = vld [vmem:[%s219 + $0x278] sm:$0xff]
        %v521 = vld [vmem:[%s219 + $0x280] sm:$0xff]
        %v522 = vld [vmem:[%s219 + $0x288] sm:$0xff]
        %v523 = vld [vmem:[%s219 + $0x290] sm:$0xff]
        %v524 = vld [vmem:[%s219 + $0x298] sm:$0xff]
        %v525 = vld [vmem:[%s219 + $0x2a0] sm:$0xff]
        %v526 = vld [vmem:[%s219 + $0x2a8] sm:$0xff]
        %v527 = vld [vmem:[%s219 + $0x2b0] sm:$0xff]
        %v528 = vld [vmem:[%s219 + $0x2b8] sm:$0xff]
        %v529 = vld [vmem:[%s219 + $0x2c0] sm:$0xff]
        %v530 = vld [vmem:[%s219 + $0x2c8] sm:$0xff]
        %v531 = vld [vmem:[%s219 + $0x2d0] sm:$0xff]
        %v532 = vld [vmem:[%s219 + $0x2d8] sm:$0xff]
        %v533 = vld [vmem:[%s219 + $0x2e0] sm:$0xff]
        %v534 = vld [vmem:[%s219 + $0x2e8] sm:$0xff]
        %v535 = vld [vmem:[%s219 + $0x2f0] sm:$0xff]
        %v536 = vld [vmem:[%s219 + $0x2f8] sm:$0xff]
        %v537 = vmul.f32 %v248, %v441
        %v538 = vmul.f32 %v249, %v442
        %v539 = vmul.f32 %v250, %v443
        %v540 = vmul.f32 %v251, %v444
        %v541 = vmul.f32 %v252, %v445
        %v542 = vmul.f32 %v253, %v446
        %v543 = vmul.f32 %v254, %v447
        %v544 = vmul.f32 %v255, %v448
        %v545 = vmul.f32 %v256, %v449
        %v546 = vmul.f32 %v257, %v450
        %v547 = vmul.f32 %v258, %v451
        %v548 = vmul.f32 %v259, %v452
        %v549 = vmul.f32 %v260, %v453
        %v550 = vmul.f32 %v261, %v454
        %v551 = vmul.f32 %v262, %v455
        %v552 = vmul.f32 %v263, %v456
        %v553 = vmul.f32 %v264, %v457
        %v554 = vmul.f32 %v265, %v458
        %v555 = vmul.f32 %v266, %v459
        %v556 = vmul.f32 %v267, %v460
        %v557 = vmul.f32 %v268, %v461
        %v558 = vmul.f32 %v269, %v462
        %v559 = vmul.f32 %v270, %v463
        %v560 = vmul.f32 %v271, %v464
        %v561 = vmul.f32 %v272, %v465
        %v562 = vmul.f32 %v273, %v466
        %v563 = vmul.f32 %v274, %v467
        %v564 = vmul.f32 %v275, %v468
        %v565 = vmul.f32 %v276, %v469
        %v566 = vmul.f32 %v277, %v470
        %v567 = vmul.f32 %v278, %v471
        %v568 = vmul.f32 %v279, %v472
        %v569 = vmul.f32 %v280, %v473
        %v570 = vmul.f32 %v281, %v474
        %v571 = vmul.f32 %v282, %v475
        %v572 = vmul.f32 %v283, %v476
        %v573 = vmul.f32 %v284, %v477
        %v574 = vmul.f32 %v285, %v478
        %v575 = vmul.f32 %v286, %v479
        %v576 = vmul.f32 %v287, %v480
        %v577 = vmul.f32 %v288, %v481
        %v578 = vmul.f32 %v289, %v482
        %v579 = vmul.f32 %v290, %v483
        %v580 = vmul.f32 %v291, %v484
        %v581 = vmul.f32 %v292, %v485
        %v582 = vmul.f32 %v293, %v486
        %v583 = vmul.f32 %v294, %v487
        %v584 = vmul.f32 %v295, %v488
        %v585 = vmul.f32 %v296, %v489
        %v586 = vmul.f32 %v297, %v490
        %v587 = vmul.f32 %v298, %v491
        %v588 = vmul.f32 %v299, %v492
        %v589 = vmul.f32 %v300, %v493
        %v590 = vmul.f32 %v301, %v494
        %v591 = vmul.f32 %v302, %v495
        %v592 = vmul.f32 %v303, %v496
        %v593 = vmul.f32 %v304, %v497
        %v594 = vmul.f32 %v305, %v498
        %v595 = vmul.f32 %v306, %v499
        %v596 = vmul.f32 %v307, %v500
        %v597 = vmul.f32 %v308, %v501
        %v598 = vmul.f32 %v309, %v502
        %v599 = vmul.f32 %v310, %v503
        %v600 = vmul.f32 %v311, %v504
        %v601 = vmul.f32 %v312, %v505
        %v602 = vmul.f32 %v313, %v506
        %v603 = vmul.f32 %v314, %v507
        %v604 = vmul.f32 %v315, %v508
        %v605 = vmul.f32 %v316, %v509
        %v606 = vmul.f32 %v317, %v510
        %v607 = vmul.f32 %v318, %v511
        %v608 = vmul.f32 %v319, %v512
        %v609 = vmul.f32 %v320, %v513
        %v610 = vmul.f32 %v321, %v514
        %v611 = vmul.f32 %v322, %v515
        %v612 = vmul.f32 %v323, %v516
        %v613 = vmul.f32 %v324, %v517
        %v614 = vmul.f32 %v325, %v518
        %v615 = vmul.f32 %v326, %v519
        %v616 = vmul.f32 %v327, %v520
        %v617 = vmul.f32 %v328, %v521
        %v618 = vmul.f32 %v329, %v522
        %v619 = vmul.f32 %v330, %v523
        %v620 = vmul.f32 %v331, %v524
        %v621 = vmul.f32 %v332, %v525
        %v622 = vmul.f32 %v333, %v526
        %v623 = vmul.f32 %v334, %v527
        %v624 = vmul.f32 %v335, %v528
        %v625 = vmul.f32 %v336, %v529
        %v626 = vmul.f32 %v337, %v530
        %v627 = vmul.f32 %v338, %v531
        %v628 = vmul.f32 %v339, %v532
        %v629 = vmul.f32 %v340, %v533
        %v630 = vmul.f32 %v341, %v534
        %v631 = vmul.f32 %v342, %v535
        %v632 = vmul.f32 %v343, %v536
        %v633 = vmul.f32 %v344, %v441
        %v634 = vmul.f32 %v345, %v442
        %v635 = vmul.f32 %v346, %v443
        %v636 = vmul.f32 %v347, %v444
        %v637 = vmul.f32 %v348, %v445
        %v638 = vmul.f32 %v349, %v446
        %v639 = vmul.f32 %v350, %v447
        %v640 = vmul.f32 %v351, %v448
        %v641 = vmul.f32 %v352, %v449
        %v642 = vmul.f32 %v353, %v450
        %v643 = vmul.f32 %v354, %v451
        %v644 = vmul.f32 %v355, %v452
        %v645 = vmul.f32 %v356, %v453
        %v646 = vmul.f32 %v357, %v454
        %v647 = vmul.f32 %v358, %v455
        %v648 = vmul.f32 %v359, %v456
        %v649 = vmul.f32 %v360, %v457
        %v650 = vmul.f32 %v361, %v458
        %v651 = vmul.f32 %v362, %v459
        %v652 = vmul.f32 %v363, %v460
        %v653 = vmul.f32 %v364, %v461
        %v654 = vmul.f32 %v365, %v462
        %v655 = vmul.f32 %v366, %v463
        %v656 = vmul.f32 %v367, %v464
        %v657 = vmul.f32 %v368, %v465
        %v658 = vmul.f32 %v369, %v466
        %v659 = vmul.f32 %v370, %v467
        %v660 = vmul.f32 %v371, %v468
        %v661 = vmul.f32 %v372, %v469
        %v662 = vmul.f32 %v373, %v470
        %v663 = vmul.f32 %v374, %v471
        %v664 = vmul.f32 %v375, %v472
        %v665 = vmul.f32 %v376, %v473
        %v666 = vmul.f32 %v377, %v474
        %v667 = vmul.f32 %v378, %v475
        %v668 = vmul.f32 %v379, %v476
        %v669 = vmul.f32 %v380, %v477
        %v670 = vmul.f32 %v381, %v478
        %v671 = vmul.f32 %v382, %v479
        %v672 = vmul.f32 %v383, %v480
        %v673 = vmul.f32 %v384, %v481
        %v674 = vmul.f32 %v385, %v482
        %v675 = vmul.f32 %v386, %v483
        %v676 = vmul.f32 %v387, %v484
        %v677 = vmul.f32 %v388, %v485
        %v678 = vmul.f32 %v389, %v486
        %v679 = vmul.f32 %v390, %v487
        %v680 = vmul.f32 %v391, %v488
        %v681 = vmul.f32 %v392, %v489
        %v682 = vmul.f32 %v393, %v490
        %v683 = vmul.f32 %v394, %v491
        %v684 = vmul.f32 %v395, %v492
        %v685 = vmul.f32 %v396, %v493
        %v686 = vmul.f32 %v397, %v494
        %v687 = vmul.f32 %v398, %v495
        %v688 = vmul.f32 %v399, %v496
        %v689 = vmul.f32 %v400, %v497
        %v690 = vmul.f32 %v401, %v498
        %v691 = vmul.f32 %v402, %v499
        %v692 = vmul.f32 %v403, %v500
        %v693 = vmul.f32 %v404, %v501
        %v694 = vmul.f32 %v405, %v502
        %v695 = vmul.f32 %v406, %v503
        %v696 = vmul.f32 %v407, %v504
        %v697 = vmul.f32 %v408, %v505
        %v698 = vmul.f32 %v409, %v506
        %v699 = vmul.f32 %v410, %v507
        %v700 = vmul.f32 %v411, %v508
        %v701 = vmul.f32 %v412, %v509
        %v702 = vmul.f32 %v413, %v510
        %v703 = vmul.f32 %v414, %v511
        %v704 = vmul.f32 %v415, %v512
        %v705 = vmul.f32 %v416, %v513
        %v706 = vmul.f32 %v417, %v514
        %v707 = vmul.f32 %v418, %v515
        %v708 = vmul.f32 %v419, %v516
        %v709 = vmul.f32 %v420, %v517
        %v710 = vmul.f32 %v421, %v518
        %v711 = vmul.f32 %v422, %v519
        %v712 = vmul.f32 %v423, %v520
        %v713 = vmul.f32 %v424, %v521
        %v714 = vmul.f32 %v425, %v522
        %v715 = vmul.f32 %v426, %v523
        %v716 = vmul.f32 %v427, %v524
        %v717 = vmul.f32 %v428, %v525
        %v718 = vmul.f32 %v429, %v526
        %v719 = vmul.f32 %v430, %v527
        %v720 = vmul.f32 %v431, %v528
        %v721 = vmul.f32 %v432, %v529
        %v722 = vmul.f32 %v433, %v530
        %v723 = vmul.f32 %v434, %v531
        %v724 = vmul.f32 %v435, %v532
        %v725 = vmul.f32 %v436, %v533
        %v726 = vmul.f32 %v437, %v534
        %v727 = vmul.f32 %v438, %v535
        %v728 = vmul.f32 %v439, %v536
        %v729 = vadd.f32 %v537, %v538
        %v730 = vadd.f32 %v729, %v539
        %v731 = vadd.f32 %v730, %v540
        %v732 = vadd.f32 %v731, %v541
        %v733 = vadd.f32 %v732, %v542
        %v734 = vadd.f32 %v733, %v543
        %v735 = vadd.f32 %v734, %v544
        %v736 = vadd.f32 %v735, %v545
        %v737 = vadd.f32 %v736, %v546
        %v738 = vadd.f32 %v737, %v547
        %v739 = vadd.f32 %v738, %v548
        %v740 = vadd.f32 %v739, %v549
        %v741 = vadd.f32 %v740, %v550
        %v742 = vadd.f32 %v741, %v551
        %v743 = vadd.f32 %v742, %v552
        %v744 = vadd.f32 %v743, %v553
        %v745 = vadd.f32 %v744, %v554
        %v746 = vadd.f32 %v745, %v555
        %v747 = vadd.f32 %v746, %v556
        %v748 = vadd.f32 %v747, %v557
        %v749 = vadd.f32 %v748, %v558
        %v750 = vadd.f32 %v749, %v559
        %v751 = vadd.f32 %v750, %v560
        %v752 = vadd.f32 %v751, %v561
        %v753 = vadd.f32 %v752, %v562
        %v754 = vadd.f32 %v753, %v563
        %v755 = vadd.f32 %v754, %v564
        %v756 = vadd.f32 %v755, %v565
        %v757 = vadd.f32 %v756, %v566
        %v758 = vadd.f32 %v757, %v567
        %v759 = vadd.f32 %v758, %v568
        %v760 = vadd.f32 %v759, %v569
        %v761 = vadd.f32 %v760, %v570
        %v762 = vadd.f32 %v761, %v571
        %v763 = vadd.f32 %v762, %v572
        %v764 = vadd.f32 %v763, %v573
        %v765 = vadd.f32 %v764, %v574
        %v766 = vadd.f32 %v765, %v575
        %v767 = vadd.f32 %v766, %v576
        %v768 = vadd.f32 %v767, %v577
        %v769 = vadd.f32 %v768, %v578
        %v770 = vadd.f32 %v769, %v579
        %v771 = vadd.f32 %v770, %v580
        %v772 = vadd.f32 %v771, %v581
        %v773 = vadd.f32 %v772, %v582
        %v774 = vadd.f32 %v773, %v583
        %v775 = vadd.f32 %v774, %v584
        %v776 = vadd.f32 %v775, %v585
        %v777 = vadd.f32 %v776, %v586
        %v778 = vadd.f32 %v777, %v587
        %v779 = vadd.f32 %v778, %v588
        %v780 = vadd.f32 %v779, %v589
        %v781 = vadd.f32 %v780, %v590
        %v782 = vadd.f32 %v781, %v591
        %v783 = vadd.f32 %v782, %v592
        %v784 = vadd.f32 %v783, %v593
        %v785 = vadd.f32 %v784, %v594
        %v786 = vadd.f32 %v785, %v595
        %v787 = vadd.f32 %v786, %v596
        %v788 = vadd.f32 %v787, %v597
        %v789 = vadd.f32 %v788, %v598
        %v790 = vadd.f32 %v789, %v599
        %v791 = vadd.f32 %v790, %v600
        %v792 = vadd.f32 %v791, %v601
        %v793 = vadd.f32 %v792, %v602
        %v794 = vadd.f32 %v793, %v603
        %v795 = vadd.f32 %v794, %v604
        %v796 = vadd.f32 %v795, %v605
        %v797 = vadd.f32 %v796, %v606
        %v798 = vadd.f32 %v797, %v607
        %v799 = vadd.f32 %v798, %v608
        %v800 = vadd.f32 %v799, %v609
        %v801 = vadd.f32 %v800, %v610
        %v802 = vadd.f32 %v801, %v611
        %v803 = vadd.f32 %v802, %v612
        %v804 = vadd.f32 %v803, %v613
        %v805 = vadd.f32 %v804, %v614
        %v806 = vadd.f32 %v805, %v615
        %v807 = vadd.f32 %v806, %v616
        %v808 = vadd.f32 %v807, %v617
        %v809 = vadd.f32 %v808, %v618
        %v810 = vadd.f32 %v809, %v619
        %v811 = vadd.f32 %v810, %v620
        %v812 = vadd.f32 %v811, %v621
        %v813 = vadd.f32 %v812, %v622
        %v814 = vadd.f32 %v813, %v623
        %v815 = vadd.f32 %v814, %v624
        %v816 = vadd.f32 %v815, %v625
        %v817 = vadd.f32 %v816, %v626
        %v818 = vadd.f32 %v817, %v627
        %v819 = vadd.f32 %v818, %v628
        %v820 = vadd.f32 %v819, %v629
        %v821 = vadd.f32 %v820, %v630
        %v822 = vadd.f32 %v821, %v631
        %v823 = vadd.f32 %v822, %v632
        %v824 = vrot.slane %v823, 4
        %v825 = vadd.f32 %v823, %v824
        %v826 = vrot.slane %v825, 2
        %v827 = vadd.f32 %v825, %v826
        %v828 = vrot.slane %v827, 1
        %v829 = vadd.f32 %v827, %v828
        %v830 = vadd.f32 %v633, %v634
        %v831 = vadd.f32 %v830, %v635
        %v832 = vadd.f32 %v831, %v636
        %v833 = vadd.f32 %v832, %v637
        %v834 = vadd.f32 %v833, %v638
        %v835 = vadd.f32 %v834, %v639
        %v836 = vadd.f32 %v835, %v640
        %v837 = vadd.f32 %v836, %v641
        %v838 = vadd.f32 %v837, %v642
        %v839 = vadd.f32 %v838, %v643
        %v840 = vadd.f32 %v839, %v644
        %v841 = vadd.f32 %v840, %v645
        %v842 = vadd.f32 %v841, %v646
        %v843 = vadd.f32 %v842, %v647
        %v844 = vadd.f32 %v843, %v648
        %v845 = vadd.f32 %v844, %v649
        %v846 = vadd.f32 %v845, %v650
        %v847 = vadd.f32 %v846, %v651
        %v848 = vadd.f32 %v847, %v652
        %v849 = vadd.f32 %v848, %v653
        %v850 = vadd.f32 %v849, %v654
        %v851 = vadd.f32 %v850, %v655
        %v852 = vadd.f32 %v851, %v656
        %v853 = vadd.f32 %v852, %v657
        %v854 = vadd.f32 %v853, %v658
        %v855 = vadd.f32 %v854, %v659
        %v856 = vadd.f32 %v855, %v660
        %v857 = vadd.f32 %v856, %v661
        %v858 = vadd.f32 %v857, %v662
        %v859 = vadd.f32 %v858, %v663
        %v860 = vadd.f32 %v859, %v664
        %v861 = vadd.f32 %v860, %v665
        %v862 = vadd.f32 %v861, %v666
        %v863 = vadd.f32 %v862, %v667
        %v864 = vadd.f32 %v863, %v668
        %v865 = vadd.f32 %v864, %v669
        %v866 = vadd.f32 %v865, %v670
        %v867 = vadd.f32 %v866, %v671
        %v868 = vadd.f32 %v867, %v672
        %v869 = vadd.f32 %v868, %v673
        %v870 = vadd.f32 %v869, %v674
        %v871 = vadd.f32 %v870, %v675
        %v872 = vadd.f32 %v871, %v676
        %v873 = vadd.f32 %v872, %v677
        %v874 = vadd.f32 %v873, %v678
        %v875 = vadd.f32 %v874, %v679
        %v876 = vadd.f32 %v875, %v680
        %v877 = vadd.f32 %v876, %v681
        %v878 = vadd.f32 %v877, %v682
        %v879 = vadd.f32 %v878, %v683
        %v880 = vadd.f32 %v879, %v684
        %v881 = vadd.f32 %v880, %v685
        %v882 = vadd.f32 %v881, %v686
        %v883 = vadd.f32 %v882, %v687
        %v884 = vadd.f32 %v883, %v688
        %v885 = vadd.f32 %v884, %v689
        %v886 = vadd.f32 %v885, %v690
        %v887 = vadd.f32 %v886, %v691
        %v888 = vadd.f32 %v887, %v692
        %v889 = vadd.f32 %v888, %v693
        %v890 = vadd.f32 %v889, %v694
        %v891 = vadd.f32 %v890, %v695
        %v892 = vadd.f32 %v891, %v696
        %v893 = vadd.f32 %v892, %v697
        %v894 = vadd.f32 %v893, %v698
        %v895 = vadd.f32 %v894, %v699
        %v896 = vadd.f32 %v895, %v700
        %v897 = vadd.f32 %v896, %v701
        %v898 = vadd.f32 %v897, %v702
        %v899 = vadd.f32 %v898, %v703
        %v900 = vadd.f32 %v899, %v704
        %v901 = vadd.f32 %v900, %v705
        %v902 = vadd.f32 %v901, %v706
        %v903 = vadd.f32 %v902, %v707
        %v904 = vadd.f32 %v903, %v708
        %v905 = vadd.f32 %v904, %v709
        %v906 = vadd.f32 %v905, %v710
        %v907 = vadd.f32 %v906, %v711
        %v908 = vadd.f32 %v907, %v712
        %v909 = vadd.f32 %v908, %v713
        %v910 = vadd.f32 %v909, %v714
        %v911 = vadd.f32 %v910, %v715
        %v912 = vadd.f32 %v911, %v716
        %v913 = vadd.f32 %v912, %v717
        %v914 = vadd.f32 %v913, %v718
        %v915 = vadd.f32 %v914, %v719
        %v916 = vadd.f32 %v915, %v720
        %v917 = vadd.f32 %v916, %v721
        %v918 = vadd.f32 %v917, %v722
        %v919 = vadd.f32 %v918, %v723
        %v920 = vadd.f32 %v919, %v724
        %v921 = vadd.f32 %v920, %v725
        %v922 = vadd.f32 %v921, %v726
        %v923 = vadd.f32 %v922, %v727
        %v924 = vadd.f32 %v923, %v728
        %v925 = vrot.slane %v924, 4
        %v926 = vadd.f32 %v924, %v925
        %v927 = vrot.slane %v926, 2
        %v928 = vadd.f32 %v926, %v927
        %v929 = vrot.slane %v928, 1
        %v930 = vadd.f32 %v928, %v929
        %vm933 = vcmask 1041409
        %v934 = vsel %vm933, %v930, %v829
        %v936 = vadd.f32 %v440, %v934
        %937 = vst [vmem:[#allocation2] sm:$0x3] %v936
        %s938 = scalar_lea.vmem [#allocation2], 2
        %v939 = vld [vmem:[%s938] sm:$0x3]
        %s940 = scalar_lea.vmem %s219, 768 [#allocation6]
        %v941 = vld [vmem:[%s940] sm:$0xff]
        %v942 = vld [vmem:[%s940 + $0x8] sm:$0xff]
        %v943 = vld [vmem:[%s940 + $0x10] sm:$0xff]
        %v944 = vld [vmem:[%s940 + $0x18] sm:$0xff]
        %v945 = vld [vmem:[%s940 + $0x20] sm:$0xff]
        %v946 = vld [vmem:[%s940 + $0x28] sm:$0xff]
        %v947 = vld [vmem:[%s940 + $0x30] sm:$0xff]
        %v948 = vld [vmem:[%s940 + $0x38] sm:$0xff]
        %v949 = vld [vmem:[%s940 + $0x40] sm:$0xff]
        %v950 = vld [vmem:[%s940 + $0x48] sm:$0xff]
        %v951 = vld [vmem:[%s940 + $0x50] sm:$0xff]
        %v952 = vld [vmem:[%s940 + $0x58] sm:$0xff]
        %v953 = vld [vmem:[%s940 + $0x60] sm:$0xff]
        %v954 = vld [vmem:[%s940 + $0x68] sm:$0xff]
        %v955 = vld [vmem:[%s940 + $0x70] sm:$0xff]
        %v956 = vld [vmem:[%s940 + $0x78] sm:$0xff]
        %v957 = vld [vmem:[%s940 + $0x80] sm:$0xff]
        %v958 = vld [vmem:[%s940 + $0x88] sm:$0xff]
        %v959 = vld [vmem:[%s940 + $0x90] sm:$0xff]
        %v960 = vld [vmem:[%s940 + $0x98] sm:$0xff]
        %v961 = vld [vmem:[%s940 + $0xa0] sm:$0xff]
        %v962 = vld [vmem:[%s940 + $0xa8] sm:$0xff]
        %v963 = vld [vmem:[%s940 + $0xb0] sm:$0xff]
        %v964 = vld [vmem:[%s940 + $0xb8] sm:$0xff]
        %v965 = vld [vmem:[%s940 + $0xc0] sm:$0xff]
        %v966 = vld [vmem:[%s940 + $0xc8] sm:$0xff]
        %v967 = vld [vmem:[%s940 + $0xd0] sm:$0xff]
        %v968 = vld [vmem:[%s940 + $0xd8] sm:$0xff]
        %v969 = vld [vmem:[%s940 + $0xe0] sm:$0xff]
        %v970 = vld [vmem:[%s940 + $0xe8] sm:$0xff]
        %v971 = vld [vmem:[%s940 + $0xf0] sm:$0xff]
        %v972 = vld [vmem:[%s940 + $0xf8] sm:$0xff]
        %v973 = vld [vmem:[%s940 + $0x100] sm:$0xff]
        %v974 = vld [vmem:[%s940 + $0x108] sm:$0xff]
        %v975 = vld [vmem:[%s940 + $0x110] sm:$0xff]
        %v976 = vld [vmem:[%s940 + $0x118] sm:$0xff]
        %v977 = vld [vmem:[%s940 + $0x120] sm:$0xff]
        %v978 = vld [vmem:[%s940 + $0x128] sm:$0xff]
        %v979 = vld [vmem:[%s940 + $0x130] sm:$0xff]
        %v980 = vld [vmem:[%s940 + $0x138] sm:$0xff]
        %v981 = vld [vmem:[%s940 + $0x140] sm:$0xff]
        %v982 = vld [vmem:[%s940 + $0x148] sm:$0xff]
        %v983 = vld [vmem:[%s940 + $0x150] sm:$0xff]
        %v984 = vld [vmem:[%s940 + $0x158] sm:$0xff]
        %v985 = vld [vmem:[%s940 + $0x160] sm:$0xff]
        %v986 = vld [vmem:[%s940 + $0x168] sm:$0xff]
        %v987 = vld [vmem:[%s940 + $0x170] sm:$0xff]
        %v988 = vld [vmem:[%s940 + $0x178] sm:$0xff]
        %v989 = vld [vmem:[%s940 + $0x180] sm:$0xff]
        %v990 = vld [vmem:[%s940 + $0x188] sm:$0xff]
        %v991 = vld [vmem:[%s940 + $0x190] sm:$0xff]
        %v992 = vld [vmem:[%s940 + $0x198] sm:$0xff]
        %v993 = vld [vmem:[%s940 + $0x1a0] sm:$0xff]
        %v994 = vld [vmem:[%s940 + $0x1a8] sm:$0xff]
        %v995 = vld [vmem:[%s940 + $0x1b0] sm:$0xff]
        %v996 = vld [vmem:[%s940 + $0x1b8] sm:$0xff]
        %v997 = vld [vmem:[%s940 + $0x1c0] sm:$0xff]
        %v998 = vld [vmem:[%s940 + $0x1c8] sm:$0xff]
        %v999 = vld [vmem:[%s940 + $0x1d0] sm:$0xff]
        %v1000 = vld [vmem:[%s940 + $0x1d8] sm:$0xff]
        %v1001 = vld [vmem:[%s940 + $0x1e0] sm:$0xff]
        %v1002 = vld [vmem:[%s940 + $0x1e8] sm:$0xff]
        %v1003 = vld [vmem:[%s940 + $0x1f0] sm:$0xff]
        %v1004 = vld [vmem:[%s940 + $0x1f8] sm:$0xff]
        %v1005 = vld [vmem:[%s940 + $0x200] sm:$0xff]
        %v1006 = vld [vmem:[%s940 + $0x208] sm:$0xff]
        %v1007 = vld [vmem:[%s940 + $0x210] sm:$0xff]
        %v1008 = vld [vmem:[%s940 + $0x218] sm:$0xff]
        %v1009 = vld [vmem:[%s940 + $0x220] sm:$0xff]
        %v1010 = vld [vmem:[%s940 + $0x228] sm:$0xff]
        %v1011 = vld [vmem:[%s940 + $0x230] sm:$0xff]
        %v1012 = vld [vmem:[%s940 + $0x238] sm:$0xff]
        %v1013 = vld [vmem:[%s940 + $0x240] sm:$0xff]
        %v1014 = vld [vmem:[%s940 + $0x248] sm:$0xff]
        %v1015 = vld [vmem:[%s940 + $0x250] sm:$0xff]
        %v1016 = vld [vmem:[%s940 + $0x258] sm:$0xff]
        %v1017 = vld [vmem:[%s940 + $0x260] sm:$0xff]
        %v1018 = vld [vmem:[%s940 + $0x268] sm:$0xff]
        %v1019 = vld [vmem:[%s940 + $0x270] sm:$0xff]
        %v1020 = vld [vmem:[%s940 + $0x278] sm:$0xff]
        %v1021 = vld [vmem:[%s940 + $0x280] sm:$0xff]
        %v1022 = vld [vmem:[%s940 + $0x288] sm:$0xff]
        %v1023 = vld [vmem:[%s940 + $0x290] sm:$0xff]
        %v1024 = vld [vmem:[%s940 + $0x298] sm:$0xff]
        %v1025 = vld [vmem:[%s940 + $0x2a0] sm:$0xff]
        %v1026 = vld [vmem:[%s940 + $0x2a8] sm:$0xff]
        %v1027 = vld [vmem:[%s940 + $0x2b0] sm:$0xff]
        %v1028 = vld [vmem:[%s940 + $0x2b8] sm:$0xff]
        %v1029 = vld [vmem:[%s940 + $0x2c0] sm:$0xff]
        %v1030 = vld [vmem:[%s940 + $0x2c8] sm:$0xff]
        %v1031 = vld [vmem:[%s940 + $0x2d0] sm:$0xff]
        %v1032 = vld [vmem:[%s940 + $0x2d8] sm:$0xff]
        %v1033 = vld [vmem:[%s940 + $0x2e0] sm:$0xff]
        %v1034 = vld [vmem:[%s940 + $0x2e8] sm:$0xff]
        %v1035 = vld [vmem:[%s940 + $0x2f0] sm:$0xff]
        %v1036 = vld [vmem:[%s940 + $0x2f8] sm:$0xff]
        %v1037 = vmul.f32 %v248, %v941
        %v1038 = vmul.f32 %v249, %v942
        %v1039 = vmul.f32 %v250, %v943
        %v1040 = vmul.f32 %v251, %v944
        %v1041 = vmul.f32 %v252, %v945
        %v1042 = vmul.f32 %v253, %v946
        %v1043 = vmul.f32 %v254, %v947
        %v1044 = vmul.f32 %v255, %v948
        %v1045 = vmul.f32 %v256, %v949
        %v1046 = vmul.f32 %v257, %v950
        %v1047 = vmul.f32 %v258, %v951
        %v1048 = vmul.f32 %v259, %v952
        %v1049 = vmul.f32 %v260, %v953
        %v1050 = vmul.f32 %v261, %v954
        %v1051 = vmul.f32 %v262, %v955
        %v1052 = vmul.f32 %v263, %v956
        %v1053 = vmul.f32 %v264, %v957
        %v1054 = vmul.f32 %v265, %v958
        %v1055 = vmul.f32 %v266, %v959
        %v1056 = vmul.f32 %v267, %v960
        %v1057 = vmul.f32 %v268, %v961
        %v1058 = vmul.f32 %v269, %v962
        %v1059 = vmul.f32 %v270, %v963
        %v1060 = vmul.f32 %v271, %v964
        %v1061 = vmul.f32 %v272, %v965
        %v1062 = vmul.f32 %v273, %v966
        %v1063 = vmul.f32 %v274, %v967
        %v1064 = vmul.f32 %v275, %v968
        %v1065 = vmul.f32 %v276, %v969
        %v1066 = vmul.f32 %v277, %v970
        %v1067 = vmul.f32 %v278, %v971
        %v1068 = vmul.f32 %v279, %v972
        %v1069 = vmul.f32 %v280, %v973
        %v1070 = vmul.f32 %v281, %v974
        %v1071 = vmul.f32 %v282, %v975
        %v1072 = vmul.f32 %v283, %v976
        %v1073 = vmul.f32 %v284, %v977
        %v1074 = vmul.f32 %v285, %v978
        %v1075 = vmul.f32 %v286, %v979
        %v1076 = vmul.f32 %v287, %v980
        %v1077 = vmul.f32 %v288, %v981
        %v1078 = vmul.f32 %v289, %v982
        %v1079 = vmul.f32 %v290, %v983
        %v1080 = vmul.f32 %v291, %v984
        %v1081 = vmul.f32 %v292, %v985
        %v1082 = vmul.f32 %v293, %v986
        %v1083 = vmul.f32 %v294, %v987
        %v1084 = vmul.f32 %v295, %v988
        %v1085 = vmul.f32 %v296, %v989
        %v1086 = vmul.f32 %v297, %v990
        %v1087 = vmul.f32 %v298, %v991
        %v1088 = vmul.f32 %v299, %v992
        %v1089 = vmul.f32 %v300, %v993
        %v1090 = vmul.f32 %v301, %v994
        %v1091 = vmul.f32 %v302, %v995
        %v1092 = vmul.f32 %v303, %v996
        %v1093 = vmul.f32 %v304, %v997
        %v1094 = vmul.f32 %v305, %v998
        %v1095 = vmul.f32 %v306, %v999
        %v1096 = vmul.f32 %v307, %v1000
        %v1097 = vmul.f32 %v308, %v1001
        %v1098 = vmul.f32 %v309, %v1002
        %v1099 = vmul.f32 %v310, %v1003
        %v1100 = vmul.f32 %v311, %v1004
        %v1101 = vmul.f32 %v312, %v1005
        %v1102 = vmul.f32 %v313, %v1006
        %v1103 = vmul.f32 %v314, %v1007
        %v1104 = vmul.f32 %v315, %v1008
        %v1105 = vmul.f32 %v316, %v1009
        %v1106 = vmul.f32 %v317, %v1010
        %v1107 = vmul.f32 %v318, %v1011
        %v1108 = vmul.f32 %v319, %v1012
        %v1109 = vmul.f32 %v320, %v1013
        %v1110 = vmul.f32 %v321, %v1014
        %v1111 = vmul.f32 %v322, %v1015
        %v1112 = vmul.f32 %v323, %v1016
        %v1113 = vmul.f32 %v324, %v1017
        %v1114 = vmul.f32 %v325, %v1018
        %v1115 = vmul.f32 %v326, %v1019
        %v1116 = vmul.f32 %v327, %v1020
        %v1117 = vmul.f32 %v328, %v1021
        %v1118 = vmul.f32 %v329, %v1022
        %v1119 = vmul.f32 %v330, %v1023
        %v1120 = vmul.f32 %v331, %v1024
        %v1121 = vmul.f32 %v332, %v1025
        %v1122 = vmul.f32 %v333, %v1026
        %v1123 = vmul.f32 %v334, %v1027
        %v1124 = vmul.f32 %v335, %v1028
        %v1125 = vmul.f32 %v336, %v1029
        %v1126 = vmul.f32 %v337, %v1030
        %v1127 = vmul.f32 %v338, %v1031
        %v1128 = vmul.f32 %v339, %v1032
        %v1129 = vmul.f32 %v340, %v1033
        %v1130 = vmul.f32 %v341, %v1034
        %v1131 = vmul.f32 %v342, %v1035
        %v1132 = vmul.f32 %v343, %v1036
        %v1133 = vmul.f32 %v344, %v941
        %v1134 = vmul.f32 %v345, %v942
        %v1135 = vmul.f32 %v346, %v943
        %v1136 = vmul.f32 %v347, %v944
        %v1137 = vmul.f32 %v348, %v945
        %v1138 = vmul.f32 %v349, %v946
        %v1139 = vmul.f32 %v350, %v947
        %v1140 = vmul.f32 %v351, %v948
        %v1141 = vmul.f32 %v352, %v949
        %v1142 = vmul.f32 %v353, %v950
        %v1143 = vmul.f32 %v354, %v951
        %v1144 = vmul.f32 %v355, %v952
        %v1145 = vmul.f32 %v356, %v953
        %v1146 = vmul.f32 %v357, %v954
        %v1147 = vmul.f32 %v358, %v955
        %v1148 = vmul.f32 %v359, %v956
        %v1149 = vmul.f32 %v360, %v957
        %v1150 = vmul.f32 %v361, %v958
        %v1151 = vmul.f32 %v362, %v959
        %v1152 = vmul.f32 %v363, %v960
        %v1153 = vmul.f32 %v364, %v961
        %v1154 = vmul.f32 %v365, %v962
        %v1155 = vmul.f32 %v366, %v963
        %v1156 = vmul.f32 %v367, %v964
        %v1157 = vmul.f32 %v368, %v965
        %v1158 = vmul.f32 %v369, %v966
        %v1159 = vmul.f32 %v370, %v967
        %v1160 = vmul.f32 %v371, %v968
        %v1161 = vmul.f32 %v372, %v969
        %v1162 = vmul.f32 %v373, %v970
        %v1163 = vmul.f32 %v374, %v971
        %v1164 = vmul.f32 %v375, %v972
        %v1165 = vmul.f32 %v376, %v973
        %v1166 = vmul.f32 %v377, %v974
        %v1167 = vmul.f32 %v378, %v975
        %v1168 = vmul.f32 %v379, %v976
        %v1169 = vmul.f32 %v380, %v977
        %v1170 = vmul.f32 %v381, %v978
        %v1171 = vmul.f32 %v382, %v979
        %v1172 = vmul.f32 %v383, %v980
        %v1173 = vmul.f32 %v384, %v981
        %v1174 = vmul.f32 %v385, %v982
        %v1175 = vmul.f32 %v386, %v983
        %v1176 = vmul.f32 %v387, %v984
        %v1177 = vmul.f32 %v388, %v985
        %v1178 = vmul.f32 %v389, %v986
        %v1179 = vmul.f32 %v390, %v987
        %v1180 = vmul.f32 %v391, %v988
        %v1181 = vmul.f32 %v392, %v989
        %v1182 = vmul.f32 %v393, %v990
        %v1183 = vmul.f32 %v394, %v991
        %v1184 = vmul.f32 %v395, %v992
        %v1185 = vmul.f32 %v396, %v993
        %v1186 = vmul.f32 %v397, %v994
        %v1187 = vmul.f32 %v398, %v995
        %v1188 = vmul.f32 %v399, %v996
        %v1189 = vmul.f32 %v400, %v997
        %v1190 = vmul.f32 %v401, %v998
        %v1191 = vmul.f32 %v402, %v999
        %v1192 = vmul.f32 %v403, %v1000
        %v1193 = vmul.f32 %v404, %v1001
        %v1194 = vmul.f32 %v405, %v1002
        %v1195 = vmul.f32 %v406, %v1003
        %v1196 = vmul.f32 %v407, %v1004
        %v1197 = vmul.f32 %v408, %v1005
        %v1198 = vmul.f32 %v409, %v1006
        %v1199 = vmul.f32 %v410, %v1007
        %v1200 = vmul.f32 %v411, %v1008
        %v1201 = vmul.f32 %v412, %v1009
        %v1202 = vmul.f32 %v413, %v1010
        %v1203 = vmul.f32 %v414, %v1011
        %v1204 = vmul.f32 %v415, %v1012
        %v1205 = vmul.f32 %v416, %v1013
        %v1206 = vmul.f32 %v417, %v1014
        %v1207 = vmul.f32 %v418, %v1015
        %v1208 = vmul.f32 %v419, %v1016
        %v1209 = vmul.f32 %v420, %v1017
        %v1210 = vmul.f32 %v421, %v1018
        %v1211 = vmul.f32 %v422, %v1019
        %v1212 = vmul.f32 %v423, %v1020
        %v1213 = vmul.f32 %v424, %v1021
        %v1214 = vmul.f32 %v425, %v1022
        %v1215 = vmul.f32 %v426, %v1023
        %v1216 = vmul.f32 %v427, %v1024
        %v1217 = vmul.f32 %v428, %v1025
        %v1218 = vmul.f32 %v429, %v1026
        %v1219 = vmul.f32 %v430, %v1027
        %v1220 = vmul.f32 %v431, %v1028
        %v1221 = vmul.f32 %v432, %v1029
        %v1222 = vmul.f32 %v433, %v1030
        %v1223 = vmul.f32 %v434, %v1031
        %v1224 = vmul.f32 %v435, %v1032
        %v1225 = vmul.f32 %v436, %v1033
        %v1226 = vmul.f32 %v437, %v1034
        %v1227 = vmul.f32 %v438, %v1035
        %v1228 = vmul.f32 %v439, %v1036
        %v1229 = vadd.f32 %v1037, %v1038
        %v1230 = vadd.f32 %v1229, %v1039
        %v1231 = vadd.f32 %v1230, %v1040
        %v1232 = vadd.f32 %v1231, %v1041
        %v1233 = vadd.f32 %v1232, %v1042
        %v1234 = vadd.f32 %v1233, %v1043
        %v1235 = vadd.f32 %v1234, %v1044
        %v1236 = vadd.f32 %v1235, %v1045
        %v1237 = vadd.f32 %v1236, %v1046
        %v1238 = vadd.f32 %v1237, %v1047
        %v1239 = vadd.f32 %v1238, %v1048
        %v1240 = vadd.f32 %v1239, %v1049
        %v1241 = vadd.f32 %v1240, %v1050
        %v1242 = vadd.f32 %v1241, %v1051
        %v1243 = vadd.f32 %v1242, %v1052
        %v1244 = vadd.f32 %v1243, %v1053
        %v1245 = vadd.f32 %v1244, %v1054
        %v1246 = vadd.f32 %v1245, %v1055
        %v1247 = vadd.f32 %v1246, %v1056
        %v1248 = vadd.f32 %v1247, %v1057
        %v1249 = vadd.f32 %v1248, %v1058
        %v1250 = vadd.f32 %v1249, %v1059
        %v1251 = vadd.f32 %v1250, %v1060
        %v1252 = vadd.f32 %v1251, %v1061
        %v1253 = vadd.f32 %v1252, %v1062
        %v1254 = vadd.f32 %v1253, %v1063
        %v1255 = vadd.f32 %v1254, %v1064
        %v1256 = vadd.f32 %v1255, %v1065
        %v1257 = vadd.f32 %v1256, %v1066
        %v1258 = vadd.f32 %v1257, %v1067
        %v1259 = vadd.f32 %v1258, %v1068
        %v1260 = vadd.f32 %v1259, %v1069
        %v1261 = vadd.f32 %v1260, %v1070
        %v1262 = vadd.f32 %v1261, %v1071
        %v1263 = vadd.f32 %v1262, %v1072
        %v1264 = vadd.f32 %v1263, %v1073
        %v1265 = vadd.f32 %v1264, %v1074
        %v1266 = vadd.f32 %v1265, %v1075
        %v1267 = vadd.f32 %v1266, %v1076
        %v1268 = vadd.f32 %v1267, %v1077
        %v1269 = vadd.f32 %v1268, %v1078
        %v1270 = vadd.f32 %v1269, %v1079
        %v1271 = vadd.f32 %v1270, %v1080
        %v1272 = vadd.f32 %v1271, %v1081
        %v1273 = vadd.f32 %v1272, %v1082
        %v1274 = vadd.f32 %v1273, %v1083
        %v1275 = vadd.f32 %v1274, %v1084
        %v1276 = vadd.f32 %v1275, %v1085
        %v1277 = vadd.f32 %v1276, %v1086
        %v1278 = vadd.f32 %v1277, %v1087
        %v1279 = vadd.f32 %v1278, %v1088
        %v1280 = vadd.f32 %v1279, %v1089
        %v1281 = vadd.f32 %v1280, %v1090
        %v1282 = vadd.f32 %v1281, %v1091
        %v1283 = vadd.f32 %v1282, %v1092
        %v1284 = vadd.f32 %v1283, %v1093
        %v1285 = vadd.f32 %v1284, %v1094
        %v1286 = vadd.f32 %v1285, %v1095
        %v1287 = vadd.f32 %v1286, %v1096
        %v1288 = vadd.f32 %v1287, %v1097
        %v1289 = vadd.f32 %v1288, %v1098
        %v1290 = vadd.f32 %v1289, %v1099
        %v1291 = vadd.f32 %v1290, %v1100
        %v1292 = vadd.f32 %v1291, %v1101
        %v1293 = vadd.f32 %v1292, %v1102
        %v1294 = vadd.f32 %v1293, %v1103
        %v1295 = vadd.f32 %v1294, %v1104
        %v1296 = vadd.f32 %v1295, %v1105
        %v1297 = vadd.f32 %v1296, %v1106
        %v1298 = vadd.f32 %v1297, %v1107
        %v1299 = vadd.f32 %v1298, %v1108
        %v1300 = vadd.f32 %v1299, %v1109
        %v1301 = vadd.f32 %v1300, %v1110
        %v1302 = vadd.f32 %v1301, %v1111
        %v1303 = vadd.f32 %v1302, %v1112
        %v1304 = vadd.f32 %v1303, %v1113
        %v1305 = vadd.f32 %v1304, %v1114
        %v1306 = vadd.f32 %v1305, %v1115
        %v1307 = vadd.f32 %v1306, %v1116
        %v1308 = vadd.f32 %v1307, %v1117
        %v1309 = vadd.f32 %v1308, %v1118
        %v1310 = vadd.f32 %v1309, %v1119
        %v1311 = vadd.f32 %v1310, %v1120
        %v1312 = vadd.f32 %v1311, %v1121
        %v1313 = vadd.f32 %v1312, %v1122
        %v1314 = vadd.f32 %v1313, %v1123
        %v1315 = vadd.f32 %v1314, %v1124
        %v1316 = vadd.f32 %v1315, %v1125
        %v1317 = vadd.f32 %v1316, %v1126
        %v1318 = vadd.f32 %v1317, %v1127
        %v1319 = vadd.f32 %v1318, %v1128
        %v1320 = vadd.f32 %v1319, %v1129
        %v1321 = vadd.f32 %v1320, %v1130
        %v1322 = vadd.f32 %v1321, %v1131
        %v1323 = vadd.f32 %v1322, %v1132
        %v1324 = vrot.slane %v1323, 4
        %v1325 = vadd.f32 %v1323, %v1324
        %v1326 = vrot.slane %v1325, 2
        %v1327 = vadd.f32 %v1325, %v1326
        %v1328 = vrot.slane %v1327, 1
        %v1329 = vadd.f32 %v1327, %v1328
        %v1330 = vadd.f32 %v1133, %v1134
        %v1331 = vadd.f32 %v1330, %v1135
        %v1332 = vadd.f32 %v1331, %v1136
        %v1333 = vadd.f32 %v1332, %v1137
        %v1334 = vadd.f32 %v1333, %v1138
        %v1335 = vadd.f32 %v1334, %v1139
        %v1336 = vadd.f32 %v1335, %v1140
        %v1337 = vadd.f32 %v1336, %v1141
        %v1338 = vadd.f32 %v1337, %v1142
        %v1339 = vadd.f32 %v1338, %v1143
        %v1340 = vadd.f32 %v1339, %v1144
        %v1341 = vadd.f32 %v1340, %v1145
        %v1342 = vadd.f32 %v1341, %v1146
        %v1343 = vadd.f32 %v1342, %v1147
        %v1344 = vadd.f32 %v1343, %v1148
        %v1345 = vadd.f32 %v1344, %v1149
        %v1346 = vadd.f32 %v1345, %v1150
        %v1347 = vadd.f32 %v1346, %v1151
        %v1348 = vadd.f32 %v1347, %v1152
        %v1349 = vadd.f32 %v1348, %v1153
        %v1350 = vadd.f32 %v1349, %v1154
        %v1351 = vadd.f32 %v1350, %v1155
        %v1352 = vadd.f32 %v1351, %v1156
        %v1353 = vadd.f32 %v1352, %v1157
        %v1354 = vadd.f32 %v1353, %v1158
        %v1355 = vadd.f32 %v1354, %v1159
        %v1356 = vadd.f32 %v1355, %v1160
        %v1357 = vadd.f32 %v1356, %v1161
        %v1358 = vadd.f32 %v1357, %v1162
        %v1359 = vadd.f32 %v1358, %v1163
        %v1360 = vadd.f32 %v1359, %v1164
        %v1361 = vadd.f32 %v1360, %v1165
        %v1362 = vadd.f32 %v1361, %v1166
        %v1363 = vadd.f32 %v1362, %v1167
        %v1364 = vadd.f32 %v1363, %v1168
        %v1365 = vadd.f32 %v1364, %v1169
        %v1366 = vadd.f32 %v1365, %v1170
        %v1367 = vadd.f32 %v1366, %v1171
        %v1368 = vadd.f32 %v1367, %v1172
        %v1369 = vadd.f32 %v1368, %v1173
        %v1370 = vadd.f32 %v1369, %v1174
        %v1371 = vadd.f32 %v1370, %v1175
        %v1372 = vadd.f32 %v1371, %v1176
        %v1373 = vadd.f32 %v1372, %v1177
        %v1374 = vadd.f32 %v1373, %v1178
        %v1375 = vadd.f32 %v1374, %v1179
        %v1376 = vadd.f32 %v1375, %v1180
        %v1377 = vadd.f32 %v1376, %v1181
        %v1378 = vadd.f32 %v1377, %v1182
        %v1379 = vadd.f32 %v1378, %v1183
        %v1380 = vadd.f32 %v1379, %v1184
        %v1381 = vadd.f32 %v1380, %v1185
        %v1382 = vadd.f32 %v1381, %v1186
        %v1383 = vadd.f32 %v1382, %v1187
        %v1384 = vadd.f32 %v1383, %v1188
        %v1385 = vadd.f32 %v1384, %v1189
        %v1386 = vadd.f32 %v1385, %v1190
        %v1387 = vadd.f32 %v1386, %v1191
        %v1388 = vadd.f32 %v1387, %v1192
        %v1389 = vadd.f32 %v1388, %v1193
        %v1390 = vadd.f32 %v1389, %v1194
        %v1391 = vadd.f32 %v1390, %v1195
        %v1392 = vadd.f32 %v1391, %v1196
        %v1393 = vadd.f32 %v1392, %v1197
        %v1394 = vadd.f32 %v1393, %v1198
        %v1395 = vadd.f32 %v1394, %v1199
        %v1396 = vadd.f32 %v1395, %v1200
        %v1397 = vadd.f32 %v1396, %v1201
        %v1398 = vadd.f32 %v1397, %v1202
        %v1399 = vadd.f32 %v1398, %v1203
        %v1400 = vadd.f32 %v1399, %v1204
        %v1401 = vadd.f32 %v1400, %v1205
        %v1402 = vadd.f32 %v1401, %v1206
        %v1403 = vadd.f32 %v1402, %v1207
        %v1404 = vadd.f32 %v1403, %v1208
        %v1405 = vadd.f32 %v1404, %v1209
        %v1406 = vadd.f32 %v1405, %v1210
        %v1407 = vadd.f32 %v1406, %v1211
        %v1408 = vadd.f32 %v1407, %v1212
        %v1409 = vadd.f32 %v1408, %v1213
        %v1410 = vadd.f32 %v1409, %v1214
        %v1411 = vadd.f32 %v1410, %v1215
        %v1412 = vadd.f32 %v1411, %v1216
        %v1413 = vadd.f32 %v1412, %v1217
        %v1414 = vadd.f32 %v1413, %v1218
        %v1415 = vadd.f32 %v1414, %v1219
        %v1416 = vadd.f32 %v1415, %v1220
        %v1417 = vadd.f32 %v1416, %v1221
        %v1418 = vadd.f32 %v1417, %v1222
        %v1419 = vadd.f32 %v1418, %v1223
        %v1420 = vadd.f32 %v1419, %v1224
        %v1421 = vadd.f32 %v1420, %v1225
        %v1422 = vadd.f32 %v1421, %v1226
        %v1423 = vadd.f32 %v1422, %v1227
        %v1424 = vadd.f32 %v1423, %v1228
        %v1425 = vrot.slane %v1424, 4
        %v1426 = vadd.f32 %v1424, %v1425
        %v1427 = vrot.slane %v1426, 2
        %v1428 = vadd.f32 %v1426, %v1427
        %v1429 = vrot.slane %v1428, 1
        %v1430 = vadd.f32 %v1428, %v1429
        %v1433 = vsel %vm933, %v1430, %v1329
        %v1435 = vadd.f32 %v939, %v1433
        %1436 = vst [vmem:[%s938] sm:$0x3] %v1435
        %p1437 = scmp.eq.s32.totalorder %s20, 7
        // Predicated region
        $region41: #{tpu_custom_call.1} parent=27 // pred_check
          %p1438 = pneg %p1437
        $region42: #{tpu_custom_call.1} parent=27 // pred_check_branch
          %1440 = sbr.rel (%p1438) target = $region44
        $region43: #{tpu_custom_call.1} parent=27 // pred_region
          %v1441 = vld [vmem:[#allocation2] sm:$0x3]
          %v1442 = vld [vmem:[#allocation2 + $0x2] sm:$0x3]
          %vm1443 = vcmask 1041408
          %v1444 = vsel %vm1443, %v1441, 0.0
          %1445 = vadd.xlane.f32.xlu0 %v1444
          %v1446 = vpop.xlane.xlu0 %1445
          %v1447 = vsel %vm1443, %v1442, 0.0
          %1448 = vadd.xlane.f32.xlu0 %v1447
          %v1449 = vpop.xlane.xlu0 %1448
          %v1452 = vlaneseq
          %v1453 = vand.u32 %v1452, 127
          %v1454 = vlaneseq
          %v1455 = vshrl.u32 %v1454, 7
          %v1456 = vsub.s32 %v1453, %v1455
          %v1457 = vrot.slane %v1446, %v1456
          %v1458 = vlaneseq
          %v1459 = vshrl.u32 %v1458, 7
          %v1460 = vsub.s32 %v1453, %v1459
          %v1461 = vrot.slane %v1449, %v1460
          %v1462 = vsel %vm933, %v1461, %v1457
          %vm1464 = vcmask 9216
          %1465 = vst.msk [vmem:[#allocation8] sm:$0x3] %vm1464, %v1462
        $region44: #{tpu_custom_call.1} parent=27 // pred_fallthru
          _
        // Predicated region
        $region45: #{tpu_custom_call.1} parent=27 // pred_check
          %p1466 = pneg %p85
        $region46: #{tpu_custom_call.1} parent=27 // pred_check_branch
          %1468 = sbr.rel (%p1466) target = $region48
        $region47: #{tpu_custom_call.1} parent=27 // pred_region
          %s1470 = ssub.s32 32, 32
          %1471 = vsyncadd [#allocation5], %s1470
          %s1473 = sshll.u32 [#allocation8], 4
          %s1474 = int_to_ptr.vmem [resolvable:$true] %s1473
          %1476 = dma.vmem_to_hbm [thread:$0]  %s1474, 32, %s2, [#allocation5]
        $region48: #{tpu_custom_call.1} parent=27 // pred_fallthru
          _
        // Predicated region
        $region49: #{tpu_custom_call.1} parent=27 // pred_check
          %p1477 = pneg %p85
        $region50: #{tpu_custom_call.1} parent=27 // pred_check_branch
          %1479 = sbr.rel (%p1477) target = $region52
        $region51: #{tpu_custom_call.1} parent=27 // pred_region
          %1480 = dma.done [#allocation5], 32
        $region52: #{tpu_custom_call.1} parent=27 // pred_fallthru
          _
      $region28: #{tpu_custom_call.1} parent=5 // pred_fallthru
        _
      %p1481 = scmp.le.s32.totalorder 2, %s15
      // Predicated region
      $region53: #{tpu_custom_call.1} parent=5 // pred_check
        %p1482 = pneg %p1481
      $region54: #{tpu_custom_call.1} parent=5 // pred_check_branch
        %1484 = sbr.rel (%p1482) target = $region56
      $region55: #{tpu_custom_call.1} parent=5 // pred_region
        %s1485 = ssub.s32 %s15, 2
      $region56: #{tpu_custom_call.1} parent=5 // pred_fallthru
        _
    $region6: #{tpu_custom_call.1} parent=1 // loop_footer
      %s19 = sadd.s32 1, %s15
    $region7: #{tpu_custom_call.1} parent=1 // loop_footer_branch
      %14 = sbr.rel target = $region3
    $region8: #{tpu_custom_call.1} parent=1 // loop_exit
      _
    %1486 = vsyncpa [#allocation4], 1
    %s1487 = scalar_lea.sflag [#allocation4], 1
    %1488 = vsyncpa %s1487, 1
    %1489 = vsyncpa [#allocation7], 1
    %s1490 = scalar_lea.sflag [#allocation7], 1
    %1491 = vsyncpa %s1490, 1
    %1492 = vsyncpa [#allocation5], 1
    %s1493 = scalar_lea.sflag [#allocation5], 1
    %1494 = vsyncpa %s1493, 1

</llo_original>
